<compile_context>
chip_gen: v7x
topology: tpu7x:2x2x1
jax: 0.10.0
libtpu: 0.0.40
codegen_flags: <defaults>
</compile_context>

<pallas_src>
import functools

import jax
import jax.numpy as jnp
from jax.experimental import pallas as pl
from jax.experimental.pallas import tpu as pltpu

EPS = 1e-3


def _bn_kernel(x_ref, gb_ref, o_ref, *, inv_l):
    # x_ref: (Cb, L)   channel-block tile in VMEM (L = true N*H*W, no padding)
    # gb_ref: (Cb, 2)  column 0 = gamma, column 1 = beta
    x = x_ref[...].astype(jnp.float32)

    # One-pass stats on the XLU (cross-lane reduce); full f32, no MXU bf16 truncation.
    s = jnp.sum(x, axis=-1, keepdims=True)            # (Cb, 1)
    ss = jnp.sum(x * x, axis=-1, keepdims=True)       # (Cb, 1)

    mean = s * inv_l
    # E[x^2] - mean^2; clamp at 0 to guard cancellation over few samples.
    var = jnp.maximum(ss * inv_l - mean * mean, 0.0)
    inv_std = jax.lax.rsqrt(var + EPS)

    # Fold the affine into per-channel (Cb,1) scale/shift BEFORE broadcasting,
    # so the full-width pass is one multiply + one add per vreg.
    scale = gb_ref[:, 0:1] * inv_std                   # gamma * inv_std
    shift = gb_ref[:, 1:2] - mean * scale              # beta  - mean * scale

    # Re-read x_ref here (instead of reusing `x`) so the full f32 tile does not
    # have to stay live in vregs across the reductions.
    o_ref[...] = (x_ref[...].astype(jnp.float32) * scale + shift).astype(o_ref.dtype)


def _dim_semantics():
    # Explicit 2-core split only where it exists (v7x); safe "parallel" hint elsewhere.
    core_parallel = getattr(pltpu, "CORE_PARALLEL", None)
    try:
        kind = jax.devices()[0].device_kind.lower()
    except Exception:
        kind = ""
    if core_parallel is not None and ("v7" in kind or "7x" in kind):
        return (core_parallel,)
    return ("parallel",)


def batchnorm2d_pallas(x_nchw, gamma, beta, *, c_block=480):
    """Training-mode BatchNorm2d forward. x_nchw: (N, C, H, W); gamma/beta: (C,)."""
    N, C, H, W = x_nchw.shape
    L = N * H * W

    # Channel tile: must divide C and be a multiple of 8 (sublane constraint).
    if C % c_block != 0 or c_block % 8 != 0:
        c_block = C  # fallback: single channel block

    # Glue: channel -> sublane axis, N*H*W -> lane axis. Free reshape for N=1.
    # NOTE: for N>1 prefer NHWC input or in-kernel N-accumulation to avoid an HBM transpose.
    x_cl = jnp.transpose(x_nchw, (1, 0, 2, 3)).reshape(C, L)

    # Merge gamma/beta into one (C, 2) array -> a single small DMA per channel block.
    gb = jnp.stack([gamma, beta], axis=1).astype(jnp.float32)

    kernel = functools.partial(_bn_kernel, inv_l=1.0 / float(L))

    grid_spec = pltpu.PrefetchScalarGridSpec(
        num_scalar_prefetch=0,
        grid=(C // c_block,),
        in_specs=[
            # Last dim = full array extent L (legal: full-dim block), no padding needed.
            pl.BlockSpec((c_block, L), lambda i: (i, 0)),
            pl.BlockSpec((c_block, 2), lambda i: (i, 0)),
        ],
        out_specs=pl.BlockSpec((c_block, L), lambda i: (i, 0)),
    )

    def run(sem):
        return pl.pallas_call(
            kernel,
            out_shape=jax.ShapeDtypeStruct((C, L), x_cl.dtype),
            grid_spec=grid_spec,
            compiler_params=pltpu.CompilerParams(dimension_semantics=sem),
        )(x_cl, gb)

    sem = _dim_semantics()
    if sem == ("parallel",):
        out_cl = run(sem)
    else:
        try:
            out_cl = run(sem)
        except Exception:
            out_cl = run(("parallel",))

    # Glue: back to NCHW (free reshape for N=1).
    return jnp.transpose(out_cl.reshape(C, N, H, W), (1, 0, 2, 3))


def batchnorm2d_ref(x_nchw, gamma, beta):
    mean = jnp.mean(x_nchw, axis=(0, 2, 3), keepdims=True)
    var = jnp.mean((x_nchw - mean) ** 2, axis=(0, 2, 3), keepdims=True)
    return (x_nchw - mean) * jax.lax.rsqrt(var + EPS) \
        * gamma.reshape(1, -1, 1, 1) + beta.reshape(1, -1, 1, 1)


if __name__ == "__main__":
    key = jax.random.PRNGKey(0)
    kx, kg, kb = jax.random.split(key, 3)

    # shapes implied by the module: BatchNorm2d(960) on [1, 960, 14, 14]
    N, C, H, W = 1, 960, 14, 14
    x = jax.random.normal(kx, (N, C, H, W), dtype=jnp.float32)

    # PyTorch default init is weight=1, bias=0; perturb slightly to exercise the affine path.
    gamma = jnp.ones((C,), jnp.float32) + 0.1 * jax.random.normal(kg, (C,), jnp.float32)
    beta = 0.1 * jax.random.normal(kb, (C,), jnp.float32)

    out = batchnorm2d_pallas(x, gamma, beta)
    out = jax.block_until_ready(out)

    ref = batchnorm2d_ref(x, gamma, beta)
    assert out.shape == (N, C, H, W)
    assert jnp.allclose(out, ref, atol=1e-4, rtol=1e-4), \
        float(jnp.max(jnp.abs(out - ref)))

    print("KERNEL_OK")
</pallas_src>

<mosaic_0001>
module attributes {stable_mosaic.version = 11 : i64} {
  func.func @_bn_kernel(%arg0: i32, %arg1: memref<480x196xf32, #tpu.memory_space<vmem>>, %arg2: memref<480x2xf32, #tpu.memory_space<vmem>>, %arg3: memref<480x196xf32, #tpu.memory_space<vmem>>) attributes {dimension_semantics = [#tpu.dimension_semantics<parallel>], iteration_bounds = array<i64: 2>, scalar_prefetch = 0 : i64, scratch_operands = 0 : i64, tpu.core_type = #tpu.core_type<tc>, window_params = [{transform_indices = @transform_0, window_bounds = array<i64: 480, 196>}, {transform_indices = @transform_1, window_bounds = array<i64: 480, 2>}, {transform_indices = @transform_2, window_bounds = array<i64: 480, 196>}]} {
    %c0 = arith.constant 0 : index
    %c0_0 = arith.constant 0 : index
    %0 = vector.load %arg1[%c0, %c0_0] : memref<480x196xf32, #tpu.memory_space<vmem>>, vector<480x196xf32>
    %cst = arith.constant dense<0.000000e+00> : vector<480xf32>
    %1 = vector.multi_reduction <add>, %0, %cst [1] : vector<480x196xf32> to vector<480xf32>
    %2 = vector.shape_cast %1 : vector<480xf32> to vector<480x1xf32>
    %3 = arith.mulf %0, %0 : vector<480x196xf32>
    %cst_1 = arith.constant dense<0.000000e+00> : vector<480xf32>
    %4 = vector.multi_reduction <add>, %3, %cst_1 [1] : vector<480x196xf32> to vector<480xf32>
    %5 = vector.shape_cast %4 : vector<480xf32> to vector<480x1xf32>
    %cst_2 = arith.constant 0.00510204071 : f32
    %6 = vector.broadcast %cst_2 : f32 to vector<480x1xf32>
    %7 = arith.mulf %2, %6 : vector<480x1xf32>
    %cst_3 = arith.constant 0.00510204071 : f32
    %8 = vector.broadcast %cst_3 : f32 to vector<480x1xf32>
    %9 = arith.mulf %5, %8 : vector<480x1xf32>
    %10 = arith.mulf %7, %7 : vector<480x1xf32>
    %11 = arith.subf %9, %10 : vector<480x1xf32>
    %cst_4 = arith.constant 0.000000e+00 : f32
    %12 = vector.broadcast %cst_4 : f32 to vector<480x1xf32>
    %13 = arith.maximumf %11, %12 : vector<480x1xf32>
    %cst_5 = arith.constant 1.000000e-03 : f32
    %14 = vector.broadcast %cst_5 : f32 to vector<480x1xf32>
    %15 = arith.addf %13, %14 : vector<480x1xf32>
    %16 = math.rsqrt %15 : vector<480x1xf32>
    %c0_6 = arith.constant 0 : index
    %c0_7 = arith.constant 0 : index
    %17 = vector.load %arg2[%c0_6, %c0_7] : memref<480x2xf32, #tpu.memory_space<vmem>>, vector<480x1xf32>
    %18 = arith.mulf %17, %16 : vector<480x1xf32>
    %c0_8 = arith.constant 0 : index
    %c1 = arith.constant 1 : index
    %19 = vector.load %arg2[%c0_8, %c1] : memref<480x2xf32, #tpu.memory_space<vmem>>, vector<480x1xf32>
    %20 = arith.mulf %7, %18 : vector<480x1xf32>
    %21 = arith.subf %19, %20 : vector<480x1xf32>
    %c0_9 = arith.constant 0 : index
    %c0_10 = arith.constant 0 : index
    %22 = vector.load %arg1[%c0_9, %c0_10] : memref<480x196xf32, #tpu.memory_space<vmem>>, vector<480x196xf32>
    %23 = vector.broadcast %18 : vector<480x1xf32> to vector<480x196xf32>
    %24 = arith.mulf %22, %23 : vector<480x196xf32>
    %25 = vector.broadcast %21 : vector<480x1xf32> to vector<480x196xf32>
    %26 = arith.addf %24, %25 : vector<480x196xf32>
    %c0_11 = arith.constant 0 : index
    %c0_12 = arith.constant 0 : index
    %27 = vector.load %arg3[%c0_11, %c0_12] : memref<480x196xf32, #tpu.memory_space<vmem>>, vector<480x196xf32>
    tpu.vector_store %arg3[%c0_11, %c0_12], %26 {strides = array<i32>} : memref<480x196xf32, #tpu.memory_space<vmem>>, vector<480x196xf32>,
    return
  }
  func.func @transform_0(%arg0: i32) -> (i32, i32) {
    %c0_i32 = arith.constant 0 : i32
    %c0_i32_0 = arith.constant 0 : i32
    return %arg0, %c0_i32 : i32, i32
  }
  func.func @transform_1(%arg0: i32) -> (i32, i32) {
    %c0_i32 = arith.constant 0 : i32
    %c0_i32_0 = arith.constant 0 : i32
    return %arg0, %c0_i32 : i32, i32
  }
  func.func @transform_2(%arg0: i32) -> (i32, i32) {
    %c0_i32 = arith.constant 0 : i32
    %c0_i32_0 = arith.constant 0 : i32
    return %arg0, %c0_i32 : i32, i32
  }
}

</mosaic_0001>

<llo_original>
// kernel: tpu_custom_call.1
$region0: #{tpu_custom_call.1}
  #allocation0 [shape = 'u32[]', space=smem, size = 0x4, offset = 0x4, fixed_abs, tag = 'smem constant byte address 0x4 - core index']
  #allocation1 [shape = 'u32[144,128]{1,0:T(1,128)}', space=vmem, size = 0x12000, scoped, tag = 'internal scratch']
  %s0 = inlined_call_operand.vmem [shape: f32[960,196], index: 0, kind: input, shape index: {}]
  %s1 = inlined_call_operand.vmem [shape: f32[960,2], index: 1, kind: input, shape index: {}]
  %s2 = inlined_call_operand.vmem [shape: f32[960,196], index: 2, kind: output, shape index: {}]
  %s3 = sld [smem:[#allocation0]]
  $region41: #{tpu_custom_call.1} parent=0
    _
  %s5 = ssub.s32 1, %s3
  %s6 = scalar_select 0, %s5, %s3
  loop: start=0, step=1, limit=4
  $region2: #{tpu_custom_call.1} parent=0 // loop_pre_header
    _
  $region3: #{tpu_custom_call.1} parent=0 // loop_header
    %s8 = sphi 0, %s12
    %p9 = scmp.ge.s32.totalorder %s8, 4
    %s18 = sphi 0, %s20
    %s21 = sphi 0, %s18
    %s22 = sphi 0, %s21
    %s38 = sphi 0, %s22
    %s44 = sphi 0, %s46
    %s47 = sphi 0, %s44
    %s48 = sphi 0, %s47
    %s64 = sphi 0, %s48
    %s70 = sphi 0, %s72
    %s73 = sphi 0, %s70
    %s74 = sphi 0, %s73
    %s90 = sphi 0, %s74
  $region4: #{tpu_custom_call.1} parent=0 // loop_header_branch
    %11 = sbr.rel (%p9) target = $region8
  $region5: #{tpu_custom_call.1} parent=0 // loop_body
    %s13 = ssub.s32 %s8, 1
    %s14 = ssub.s32 %s8, 2
    %s15 = sadd.s32 %s8, 1
    %s16 = ssub.s32 %s8, %s15
    %p17 = scmp.eq.s32.totalorder %s16, 0
    %s19 = sadd.s32 %s18, 1
    %s20 = scalar_select %p17, %s18, %s19
    %p23 = pneg %p17
    %p24 = scmp.eq.s32.totalorder %s8, 1
    %p25 = por %p23, %p24
    %p26 = scmp.ne.s32.totalorder %s18, %s21
    %p27 = scmp.eq.s32.totalorder %s8, 0
    %p28 = por %p26, %p27
    %p29 = scmp.ne.s32.totalorder %s18, %s21
    %p30 = scmp.eq.s32.totalorder %s13, 1
    %p31 = por %p29, %p30
    %p32 = scmp.ne.s32.totalorder %s21, %s22
    %p33 = scmp.eq.s32.totalorder %s13, 0
    %p34 = por %p32, %p33
    %p35 = scmp.ne.s32.totalorder %s21, %s22
    %p36 = scmp.eq.s32.totalorder %s14, 1
    %p37 = por %p35, %p36
    %p39 = scmp.ne.s32.totalorder %s22, %s38
    %p40 = scmp.eq.s32.totalorder %s14, 0
    %p41 = por %p39, %p40
    %s42 = ssub.s32 %s8, %s15
    %p43 = scmp.eq.s32.totalorder %s42, 0
    %s45 = sadd.s32 %s44, 1
    %s46 = scalar_select %p43, %s44, %s45
    %p49 = pneg %p43
    %p50 = scmp.eq.s32.totalorder %s8, 1
    %p51 = por %p49, %p50
    %p52 = scmp.ne.s32.totalorder %s44, %s47
    %p53 = scmp.eq.s32.totalorder %s8, 0
    %p54 = por %p52, %p53
    %p55 = scmp.ne.s32.totalorder %s44, %s47
    %p56 = scmp.eq.s32.totalorder %s13, 1
    %p57 = por %p55, %p56
    %p58 = scmp.ne.s32.totalorder %s47, %s48
    %p59 = scmp.eq.s32.totalorder %s13, 0
    %p60 = por %p58, %p59
    %p61 = scmp.ne.s32.totalorder %s47, %s48
    %p62 = scmp.eq.s32.totalorder %s14, 1
    %p63 = por %p61, %p62
    %p65 = scmp.ne.s32.totalorder %s48, %s64
    %p66 = scmp.eq.s32.totalorder %s14, 0
    %p67 = por %p65, %p66
    %s68 = ssub.s32 %s8, %s15
    %p69 = scmp.eq.s32.totalorder %s68, 0
    %s71 = sadd.s32 %s70, 1
    %s72 = scalar_select %p69, %s70, %s71
    %p75 = pneg %p69
    %p76 = scmp.eq.s32.totalorder %s8, 1
    %p77 = por %p75, %p76
    %p78 = scmp.ne.s32.totalorder %s70, %s73
    %p79 = scmp.eq.s32.totalorder %s8, 0
    %p80 = por %p78, %p79
    %p81 = scmp.ne.s32.totalorder %s70, %s73
    %p82 = scmp.eq.s32.totalorder %s13, 1
    %p83 = por %p81, %p82
    %p84 = scmp.ne.s32.totalorder %s73, %s74
    %p85 = scmp.eq.s32.totalorder %s13, 0
    %p86 = por %p84, %p85
    %p87 = scmp.ne.s32.totalorder %s73, %s74
    %p88 = scmp.eq.s32.totalorder %s14, 1
    %p89 = por %p87, %p88
    %p91 = scmp.ne.s32.totalorder %s74, %s90
    %p92 = scmp.eq.s32.totalorder %s14, 0
    %p93 = por %p91, %p92
    %p94 = scmp.le.s32.totalorder 1, %s8
    %p95 = scmp.lt.s32.totalorder %s8, 3
    %p96 = pnand %p94, %p95
    %p97 = pneg %p96
    // Predicated region
    $region9: #{tpu_custom_call.1} parent=5 // pred_check
      _
    $region10: #{tpu_custom_call.1} parent=5 // pred_check_branch
      %99 = sbr.rel (%p96) target = $region12
    $region11: #{tpu_custom_call.1} parent=5 // pred_region
      %s100 = ssub.s32 %s8, 1
    $region12: #{tpu_custom_call.1} parent=5 // pred_fallthru
      _
    %p101 = scmp.lt.s32.totalorder %s8, 2
    // Predicated region
    $region13: #{tpu_custom_call.1} parent=5 // pred_check
      %p102 = pneg %p101
    $region14: #{tpu_custom_call.1} parent=5 // pred_check_branch
      %104 = sbr.rel (%p102) target = $region16
    $region15: #{tpu_custom_call.1} parent=5 // pred_region
      // Predicated region
      $region17: #{tpu_custom_call.1} parent=15 // pred_check
        %p105 = pneg %p28
      $region18: #{tpu_custom_call.1} parent=15 // pred_check_branch
        %107 = sbr.rel (%p105) target = $region20
      $region19: #{tpu_custom_call.1} parent=15 // pred_region
        %s108 = smul.u32 60, %s8
        %p109 = scmp.lt.s32.totalorder %s108, 119
        %s110 = scalar_select %p109, %s108, 119
        %s111 = smul.addr %s110, 2
        %s112 = smul.addr %s111, 8
        %s113 = scalar_lea.vmem %s0, %s112
        %s114 = smul.u32 60, %s8
      $region20: #{tpu_custom_call.1} parent=15 // pred_fallthru
        _
      // Predicated region
      $region21: #{tpu_custom_call.1} parent=15 // pred_check
        %p115 = pneg %p54
      $region22: #{tpu_custom_call.1} parent=15 // pred_check_branch
        %117 = sbr.rel (%p115) target = $region24
      $region23: #{tpu_custom_call.1} parent=15 // pred_region
        %s118 = smul.u32 60, %s8
        %p119 = scmp.lt.s32.totalorder %s118, 119
        %s120 = scalar_select %p119, %s118, 119
        %s121 = smul.addr %s120, 8
        %s122 = scalar_lea.vmem %s1, %s121
        %s123 = smul.u32 60, %s8
      $region24: #{tpu_custom_call.1} parent=15 // pred_fallthru
        _
    $region16: #{tpu_custom_call.1} parent=5 // pred_fallthru
      _
    %p124 = scmp.le.s32.totalorder 1, %s8
    %p125 = scmp.lt.s32.totalorder %s8, 3
    %p126 = pnand %p124, %p125
    %p127 = pneg %p126
    // Predicated region
    $region25: #{tpu_custom_call.1} parent=5 // pred_check
      _
    $region26: #{tpu_custom_call.1} parent=5 // pred_check_branch
      %129 = sbr.rel (%p126) target = $region28
    $region27: #{tpu_custom_call.1} parent=5 // pred_region
      %s130 = ssub.s32 %s8, 1
      %s131 = smul.u32 60, %s13
      %p132 = scmp.lt.s32.totalorder %s131, 119
      %s133 = scalar_select %p132, %s131, 119
      %s134 = smul.addr %s133, 2
      %s135 = smul.addr %s134, 8
      %s136 = scalar_lea.vmem %s0, %s135
      %p137 = pneg %p34
      %p138 = pneg %p31
      %s139 = smul.u32 60, %s13
      %p140 = scmp.lt.s32.totalorder %s139, 119
      %s141 = scalar_select %p140, %s139, 119
      %s142 = smul.addr %s141, 8
      %s143 = scalar_lea.vmem %s1, %s142
      %p144 = pneg %p60
      %p145 = pneg %p57
      %p146 = pneg %p86
      %p147 = pneg %p83
      %s148 = smul.u32 60, %s13
      %p149 = scmp.lt.s32.totalorder %s148, 119
      %s150 = scalar_select %p149, %s148, 119
      %s151 = smul.addr %s150, 2
      %s152 = smul.addr %s151, 8
      %s153 = scalar_lea.vmem %s2, %s152
      %s154 = smul.u32 60, %s13
      %p155 = scmp.lt.s32.totalorder %s154, 119
      %s156 = scalar_select %p155, %s154, 119
      %s157 = smul.addr %s156, 2
      %s158 = smul.addr %s157, 8
      %s159 = scalar_lea.vmem %s0, %s158
      %s160 = smul.u32 60, %s13
      %s161 = smul.u32 60, %s13
      %p162 = scmp.lt.s32.totalorder %s161, 119
      %s163 = scalar_select %p162, %s161, 119
      %s164 = smul.addr %s163, 8
      %s165 = scalar_lea.vmem %s1, %s164
      %s166 = smul.u32 60, %s13
      %s167 = smul.u32 60, %s13
      %p168 = scmp.lt.s32.totalorder %s167, 119
      %s169 = scalar_select %p168, %s167, 119
      %s170 = smul.addr %s169, 2
      %s171 = smul.addr %s170, 8
      %s172 = scalar_lea.vmem %s2, %s171
      %s173 = smul.u32 60, %s13
      %v174 = vld [vmem:[%s159] sm:$0xff]
      %v175 = vld [vmem:[%s159 + $0x8] sm:$0xff]
      %v176 = vld [vmem:[%s159 + $0x10] sm:$0xff]
      %v177 = vld [vmem:[%s159 + $0x18] sm:$0xff]
      %v178 = vld [vmem:[%s159 + $0x20] sm:$0xff]
      %v179 = vld [vmem:[%s159 + $0x28] sm:$0xff]
      %v180 = vld [vmem:[%s159 + $0x30] sm:$0xff]
      %v181 = vld [vmem:[%s159 + $0x38] sm:$0xff]
      %v182 = vld [vmem:[%s159 + $0x40] sm:$0xff]
      %v183 = vld [vmem:[%s159 + $0x48] sm:$0xff]
      %v184 = vld [vmem:[%s159 + $0x50] sm:$0xff]
      %v185 = vld [vmem:[%s159 + $0x58] sm:$0xff]
      %v186 = vld [vmem:[%s159 + $0x60] sm:$0xff]
      %v187 = vld [vmem:[%s159 + $0x68] sm:$0xff]
      %v188 = vld [vmem:[%s159 + $0x70] sm:$0xff]
      %v189 = vld [vmem:[%s159 + $0x78] sm:$0xff]
      %v190 = vld [vmem:[%s159 + $0x80] sm:$0xff]
      %v191 = vld [vmem:[%s159 + $0x88] sm:$0xff]
      %v192 = vld [vmem:[%s159 + $0x90] sm:$0xff]
      %v193 = vld [vmem:[%s159 + $0x98] sm:$0xff]
      %v194 = vld [vmem:[%s159 + $0xa0] sm:$0xff]
      %v195 = vld [vmem:[%s159 + $0xa8] sm:$0xff]
      %v196 = vld [vmem:[%s159 + $0xb0] sm:$0xff]
      %v197 = vld [vmem:[%s159 + $0xb8] sm:$0xff]
      %v198 = vld [vmem:[%s159 + $0xc0] sm:$0xff]
      %v199 = vld [vmem:[%s159 + $0xc8] sm:$0xff]
      %v200 = vld [vmem:[%s159 + $0xd0] sm:$0xff]
      %v201 = vld [vmem:[%s159 + $0xd8] sm:$0xff]
      %v202 = vld [vmem:[%s159 + $0xe0] sm:$0xff]
      %v203 = vld [vmem:[%s159 + $0xe8] sm:$0xff]
      %v204 = vld [vmem:[%s159 + $0xf0] sm:$0xff]
      %v205 = vld [vmem:[%s159 + $0xf8] sm:$0xff]
      %v206 = vld [vmem:[%s159 + $0x100] sm:$0xff]
      %v207 = vld [vmem:[%s159 + $0x108] sm:$0xff]
      %v208 = vld [vmem:[%s159 + $0x110] sm:$0xff]
      %v209 = vld [vmem:[%s159 + $0x118] sm:$0xff]
      %v210 = vld [vmem:[%s159 + $0x120] sm:$0xff]
      %v211 = vld [vmem:[%s159 + $0x128] sm:$0xff]
      %v212 = vld [vmem:[%s159 + $0x130] sm:$0xff]
      %v213 = vld [vmem:[%s159 + $0x138] sm:$0xff]
      %v214 = vld [vmem:[%s159 + $0x140] sm:$0xff]
      %v215 = vld [vmem:[%s159 + $0x148] sm:$0xff]
      %v216 = vld [vmem:[%s159 + $0x150] sm:$0xff]
      %v217 = vld [vmem:[%s159 + $0x158] sm:$0xff]
      %v218 = vld [vmem:[%s159 + $0x160] sm:$0xff]
      %v219 = vld [vmem:[%s159 + $0x168] sm:$0xff]
      %v220 = vld [vmem:[%s159 + $0x170] sm:$0xff]
      %v221 = vld [vmem:[%s159 + $0x178] sm:$0xff]
      %v222 = vld [vmem:[%s159 + $0x180] sm:$0xff]
      %v223 = vld [vmem:[%s159 + $0x188] sm:$0xff]
      %v224 = vld [vmem:[%s159 + $0x190] sm:$0xff]
      %v225 = vld [vmem:[%s159 + $0x198] sm:$0xff]
      %v226 = vld [vmem:[%s159 + $0x1a0] sm:$0xff]
      %v227 = vld [vmem:[%s159 + $0x1a8] sm:$0xff]
      %v228 = vld [vmem:[%s159 + $0x1b0] sm:$0xff]
      %v229 = vld [vmem:[%s159 + $0x1b8] sm:$0xff]
      %v230 = vld [vmem:[%s159 + $0x1c0] sm:$0xff]
      %v231 = vld [vmem:[%s159 + $0x1c8] sm:$0xff]
      %v232 = vld [vmem:[%s159 + $0x1d0] sm:$0xff]
      %v233 = vld [vmem:[%s159 + $0x1d8] sm:$0xff]
      %v234 = vld [vmem:[%s159 + $0x1e0] sm:$0xff]
      %v235 = vld [vmem:[%s159 + $0x1e8] sm:$0xff]
      %v236 = vld [vmem:[%s159 + $0x1f0] sm:$0xff]
      %v237 = vld [vmem:[%s159 + $0x1f8] sm:$0xff]
      %v238 = vld [vmem:[%s159 + $0x200] sm:$0xff]
      %v239 = vld [vmem:[%s159 + $0x208] sm:$0xff]
      %v240 = vld [vmem:[%s159 + $0x210] sm:$0xff]
      %v241 = vld [vmem:[%s159 + $0x218] sm:$0xff]
      %v242 = vld [vmem:[%s159 + $0x220] sm:$0xff]
      %v243 = vld [vmem:[%s159 + $0x228] sm:$0xff]
      %v244 = vld [vmem:[%s159 + $0x230] sm:$0xff]
      %v245 = vld [vmem:[%s159 + $0x238] sm:$0xff]
      %v246 = vld [vmem:[%s159 + $0x240] sm:$0xff]
      %v247 = vld [vmem:[%s159 + $0x248] sm:$0xff]
      %v248 = vld [vmem:[%s159 + $0x250] sm:$0xff]
      %v249 = vld [vmem:[%s159 + $0x258] sm:$0xff]
      %v250 = vld [vmem:[%s159 + $0x260] sm:$0xff]
      %v251 = vld [vmem:[%s159 + $0x268] sm:$0xff]
      %v252 = vld [vmem:[%s159 + $0x270] sm:$0xff]
      %v253 = vld [vmem:[%s159 + $0x278] sm:$0xff]
      %v254 = vld [vmem:[%s159 + $0x280] sm:$0xff]
      %v255 = vld [vmem:[%s159 + $0x288] sm:$0xff]
      %v256 = vld [vmem:[%s159 + $0x290] sm:$0xff]
      %v257 = vld [vmem:[%s159 + $0x298] sm:$0xff]
      %v258 = vld [vmem:[%s159 + $0x2a0] sm:$0xff]
      %v259 = vld [vmem:[%s159 + $0x2a8] sm:$0xff]
      %v260 = vld [vmem:[%s159 + $0x2b0] sm:$0xff]
      %v261 = vld [vmem:[%s159 + $0x2b8] sm:$0xff]
      %v262 = vld [vmem:[%s159 + $0x2c0] sm:$0xff]
      %v263 = vld [vmem:[%s159 + $0x2c8] sm:$0xff]
      %v264 = vld [vmem:[%s159 + $0x2d0] sm:$0xff]
      %v265 = vld [vmem:[%s159 + $0x2d8] sm:$0xff]
      %v266 = vld [vmem:[%s159 + $0x2e0] sm:$0xff]
      %v267 = vld [vmem:[%s159 + $0x2e8] sm:$0xff]
      %v268 = vld [vmem:[%s159 + $0x2f0] sm:$0xff]
      %v269 = vld [vmem:[%s159 + $0x2f8] sm:$0xff]
      %v270 = vld [vmem:[%s159 + $0x300] sm:$0xff]
      %v271 = vld [vmem:[%s159 + $0x308] sm:$0xff]
      %v272 = vld [vmem:[%s159 + $0x310] sm:$0xff]
      %v273 = vld [vmem:[%s159 + $0x318] sm:$0xff]
      %v274 = vld [vmem:[%s159 + $0x320] sm:$0xff]
      %v275 = vld [vmem:[%s159 + $0x328] sm:$0xff]
      %v276 = vld [vmem:[%s159 + $0x330] sm:$0xff]
      %v277 = vld [vmem:[%s159 + $0x338] sm:$0xff]
      %v278 = vld [vmem:[%s159 + $0x340] sm:$0xff]
      %v279 = vld [vmem:[%s159 + $0x348] sm:$0xff]
      %v280 = vld [vmem:[%s159 + $0x350] sm:$0xff]
      %v281 = vld [vmem:[%s159 + $0x358] sm:$0xff]
      %v282 = vld [vmem:[%s159 + $0x360] sm:$0xff]
      %v283 = vld [vmem:[%s159 + $0x368] sm:$0xff]
      %v284 = vld [vmem:[%s159 + $0x370] sm:$0xff]
      %v285 = vld [vmem:[%s159 + $0x378] sm:$0xff]
      %v286 = vld [vmem:[%s159 + $0x380] sm:$0xff]
      %v287 = vld [vmem:[%s159 + $0x388] sm:$0xff]
      %v288 = vld [vmem:[%s159 + $0x390] sm:$0xff]
      %v289 = vld [vmem:[%s159 + $0x398] sm:$0xff]
      %v290 = vld [vmem:[%s159 + $0x3a0] sm:$0xff]
      %v291 = vld [vmem:[%s159 + $0x3a8] sm:$0xff]
      %v292 = vld [vmem:[%s159 + $0x3b0] sm:$0xff]
      %v293 = vld [vmem:[%s159 + $0x3b8] sm:$0xff]
      %vm294 = vcmask 556032
      %v295 = vsel %vm294, %v175, 0.0
      %v296 = vadd.f32 %v174, %v295
      %297 = vadd.xlane.f32.xlu0 %v296
      %v298 = vpop.xlane.xlu0 %297
      %v299 = vsel %vm294, %v177, 0.0
      %v300 = vadd.f32 %v176, %v299
      %301 = vadd.xlane.f32.xlu0 %v300
      %v302 = vpop.xlane.xlu0 %301
      %v303 = vsel %vm294, %v179, 0.0
      %v304 = vadd.f32 %v178, %v303
      %305 = vadd.xlane.f32.xlu0 %v304
      %v306 = vpop.xlane.xlu0 %305
      %v307 = vsel %vm294, %v181, 0.0
      %v308 = vadd.f32 %v180, %v307
      %309 = vadd.xlane.f32.xlu0 %v308
      %v310 = vpop.xlane.xlu0 %309
      %v311 = vsel %vm294, %v183, 0.0
      %v312 = vadd.f32 %v182, %v311
      %313 = vadd.xlane.f32.xlu0 %v312
      %v314 = vpop.xlane.xlu0 %313
      %v315 = vsel %vm294, %v185, 0.0
      %v316 = vadd.f32 %v184, %v315
      %317 = vadd.xlane.f32.xlu0 %v316
      %v318 = vpop.xlane.xlu0 %317
      %v319 = vsel %vm294, %v187, 0.0
      %v320 = vadd.f32 %v186, %v319
      %321 = vadd.xlane.f32.xlu0 %v320
      %v322 = vpop.xlane.xlu0 %321
      %v323 = vsel %vm294, %v189, 0.0
      %v324 = vadd.f32 %v188, %v323
      %325 = vadd.xlane.f32.xlu0 %v324
      %v326 = vpop.xlane.xlu0 %325
      %v327 = vsel %vm294, %v191, 0.0
      %v328 = vadd.f32 %v190, %v327
      %329 = vadd.xlane.f32.xlu0 %v328
      %v330 = vpop.xlane.xlu0 %329
      %v331 = vsel %vm294, %v193, 0.0
      %v332 = vadd.f32 %v192, %v331
      %333 = vadd.xlane.f32.xlu0 %v332
      %v334 = vpop.xlane.xlu0 %333
      %v335 = vsel %vm294, %v195, 0.0
      %v336 = vadd.f32 %v194, %v335
      %337 = vadd.xlane.f32.xlu0 %v336
      %v338 = vpop.xlane.xlu0 %337
      %v339 = vsel %vm294, %v197, 0.0
      %v340 = vadd.f32 %v196, %v339
      %341 = vadd.xlane.f32.xlu0 %v340
      %v342 = vpop.xlane.xlu0 %341
      %v343 = vsel %vm294, %v199, 0.0
      %v344 = vadd.f32 %v198, %v343
      %345 = vadd.xlane.f32.xlu0 %v344
      %v346 = vpop.xlane.xlu0 %345
      %v347 = vsel %vm294, %v201, 0.0
      %v348 = vadd.f32 %v200, %v347
      %349 = vadd.xlane.f32.xlu0 %v348
      %v350 = vpop.xlane.xlu0 %349
      %v351 = vsel %vm294, %v203, 0.0
      %v352 = vadd.f32 %v202, %v351
      %353 = vadd.xlane.f32.xlu0 %v352
      %v354 = vpop.xlane.xlu0 %353
      %v355 = vsel %vm294, %v205, 0.0
      %v356 = vadd.f32 %v204, %v355
      %357 = vadd.xlane.f32.xlu0 %v356
      %v358 = vpop.xlane.xlu0 %357
      %v359 = vsel %vm294, %v207, 0.0
      %v360 = vadd.f32 %v206, %v359
      %361 = vadd.xlane.f32.xlu0 %v360
      %v362 = vpop.xlane.xlu0 %361
      %v363 = vsel %vm294, %v209, 0.0
      %v364 = vadd.f32 %v208, %v363
      %365 = vadd.xlane.f32.xlu0 %v364
      %v366 = vpop.xlane.xlu0 %365
      %v367 = vsel %vm294, %v211, 0.0
      %v368 = vadd.f32 %v210, %v367
      %369 = vadd.xlane.f32.xlu0 %v368
      %v370 = vpop.xlane.xlu0 %369
      %v371 = vsel %vm294, %v213, 0.0
      %v372 = vadd.f32 %v212, %v371
      %373 = vadd.xlane.f32.xlu0 %v372
      %v374 = vpop.xlane.xlu0 %373
      %v375 = vsel %vm294, %v215, 0.0
      %v376 = vadd.f32 %v214, %v375
      %377 = vadd.xlane.f32.xlu0 %v376
      %v378 = vpop.xlane.xlu0 %377
      %v379 = vsel %vm294, %v217, 0.0
      %v380 = vadd.f32 %v216, %v379
      %381 = vadd.xlane.f32.xlu0 %v380
      %v382 = vpop.xlane.xlu0 %381
      %v383 = vsel %vm294, %v219, 0.0
      %v384 = vadd.f32 %v218, %v383
      %385 = vadd.xlane.f32.xlu0 %v384
      %v386 = vpop.xlane.xlu0 %385
      %v387 = vsel %vm294, %v221, 0.0
      %v388 = vadd.f32 %v220, %v387
      %389 = vadd.xlane.f32.xlu0 %v388
      %v390 = vpop.xlane.xlu0 %389
      %v391 = vsel %vm294, %v223, 0.0
      %v392 = vadd.f32 %v222, %v391
      %393 = vadd.xlane.f32.xlu0 %v392
      %v394 = vpop.xlane.xlu0 %393
      %v395 = vsel %vm294, %v225, 0.0
      %v396 = vadd.f32 %v224, %v395
      %397 = vadd.xlane.f32.xlu0 %v396
      %v398 = vpop.xlane.xlu0 %397
      %v399 = vsel %vm294, %v227, 0.0
      %v400 = vadd.f32 %v226, %v399
      %401 = vadd.xlane.f32.xlu0 %v400
      %v402 = vpop.xlane.xlu0 %401
      %v403 = vsel %vm294, %v229, 0.0
      %v404 = vadd.f32 %v228, %v403
      %405 = vadd.xlane.f32.xlu0 %v404
      %v406 = vpop.xlane.xlu0 %405
      %v407 = vsel %vm294, %v231, 0.0
      %v408 = vadd.f32 %v230, %v407
      %409 = vadd.xlane.f32.xlu0 %v408
      %v410 = vpop.xlane.xlu0 %409
      %v411 = vsel %vm294, %v233, 0.0
      %v412 = vadd.f32 %v232, %v411
      %413 = vadd.xlane.f32.xlu0 %v412
      %v414 = vpop.xlane.xlu0 %413
      %v415 = vsel %vm294, %v235, 0.0
      %v416 = vadd.f32 %v234, %v415
      %417 = vadd.xlane.f32.xlu0 %v416
      %v418 = vpop.xlane.xlu0 %417
      %v419 = vsel %vm294, %v237, 0.0
      %v420 = vadd.f32 %v236, %v419
      %421 = vadd.xlane.f32.xlu0 %v420
      %v422 = vpop.xlane.xlu0 %421
      %v423 = vsel %vm294, %v239, 0.0
      %v424 = vadd.f32 %v238, %v423
      %425 = vadd.xlane.f32.xlu0 %v424
      %v426 = vpop.xlane.xlu0 %425
      %v427 = vsel %vm294, %v241, 0.0
      %v428 = vadd.f32 %v240, %v427
      %429 = vadd.xlane.f32.xlu0 %v428
      %v430 = vpop.xlane.xlu0 %429
      %v431 = vsel %vm294, %v243, 0.0
      %v432 = vadd.f32 %v242, %v431
      %433 = vadd.xlane.f32.xlu0 %v432
      %v434 = vpop.xlane.xlu0 %433
      %v435 = vsel %vm294, %v245, 0.0
      %v436 = vadd.f32 %v244, %v435
      %437 = vadd.xlane.f32.xlu0 %v436
      %v438 = vpop.xlane.xlu0 %437
      %v439 = vsel %vm294, %v247, 0.0
      %v440 = vadd.f32 %v246, %v439
      %441 = vadd.xlane.f32.xlu0 %v440
      %v442 = vpop.xlane.xlu0 %441
      %v443 = vsel %vm294, %v249, 0.0
      %v444 = vadd.f32 %v248, %v443
      %445 = vadd.xlane.f32.xlu0 %v444
      %v446 = vpop.xlane.xlu0 %445
      %v447 = vsel %vm294, %v251, 0.0
      %v448 = vadd.f32 %v250, %v447
      %449 = vadd.xlane.f32.xlu0 %v448
      %v450 = vpop.xlane.xlu0 %449
      %v451 = vsel %vm294, %v253, 0.0
      %v452 = vadd.f32 %v252, %v451
      %453 = vadd.xlane.f32.xlu0 %v452
      %v454 = vpop.xlane.xlu0 %453
      %v455 = vsel %vm294, %v255, 0.0
      %v456 = vadd.f32 %v254, %v455
      %457 = vadd.xlane.f32.xlu0 %v456
      %v458 = vpop.xlane.xlu0 %457
      %v459 = vsel %vm294, %v257, 0.0
      %v460 = vadd.f32 %v256, %v459
      %461 = vadd.xlane.f32.xlu0 %v460
      %v462 = vpop.xlane.xlu0 %461
      %v463 = vsel %vm294, %v259, 0.0
      %v464 = vadd.f32 %v258, %v463
      %465 = vadd.xlane.f32.xlu0 %v464
      %v466 = vpop.xlane.xlu0 %465
      %v467 = vsel %vm294, %v261, 0.0
      %v468 = vadd.f32 %v260, %v467
      %469 = vadd.xlane.f32.xlu0 %v468
      %v470 = vpop.xlane.xlu0 %469
      %v471 = vsel %vm294, %v263, 0.0
      %v472 = vadd.f32 %v262, %v471
      %473 = vadd.xlane.f32.xlu0 %v472
      %v474 = vpop.xlane.xlu0 %473
      %v475 = vsel %vm294, %v265, 0.0
      %v476 = vadd.f32 %v264, %v475
      %477 = vadd.xlane.f32.xlu0 %v476
      %v478 = vpop.xlane.xlu0 %477
      %v479 = vsel %vm294, %v267, 0.0
      %v480 = vadd.f32 %v266, %v479
      %481 = vadd.xlane.f32.xlu0 %v480
      %v482 = vpop.xlane.xlu0 %481
      %v483 = vsel %vm294, %v269, 0.0
      %v484 = vadd.f32 %v268, %v483
      %485 = vadd.xlane.f32.xlu0 %v484
      %v486 = vpop.xlane.xlu0 %485
      %v487 = vsel %vm294, %v271, 0.0
      %v488 = vadd.f32 %v270, %v487
      %489 = vadd.xlane.f32.xlu0 %v488
      %v490 = vpop.xlane.xlu0 %489
      %v491 = vsel %vm294, %v273, 0.0
      %v492 = vadd.f32 %v272, %v491
      %493 = vadd.xlane.f32.xlu0 %v492
      %v494 = vpop.xlane.xlu0 %493
      %v495 = vsel %vm294, %v275, 0.0
      %v496 = vadd.f32 %v274, %v495
      %497 = vadd.xlane.f32.xlu0 %v496
      %v498 = vpop.xlane.xlu0 %497
      %v499 = vsel %vm294, %v277, 0.0
      %v500 = vadd.f32 %v276, %v499
      %501 = vadd.xlane.f32.xlu0 %v500
      %v502 = vpop.xlane.xlu0 %501
      %v503 = vsel %vm294, %v279, 0.0
      %v504 = vadd.f32 %v278, %v503
      %505 = vadd.xlane.f32.xlu0 %v504
      %v506 = vpop.xlane.xlu0 %505
      %v507 = vsel %vm294, %v281, 0.0
      %v508 = vadd.f32 %v280, %v507
      %509 = vadd.xlane.f32.xlu0 %v508
      %v510 = vpop.xlane.xlu0 %509
      %v511 = vsel %vm294, %v283, 0.0
      %v512 = vadd.f32 %v282, %v511
      %513 = vadd.xlane.f32.xlu0 %v512
      %v514 = vpop.xlane.xlu0 %513
      %v515 = vsel %vm294, %v285, 0.0
      %v516 = vadd.f32 %v284, %v515
      %517 = vadd.xlane.f32.xlu0 %v516
      %v518 = vpop.xlane.xlu0 %517
      %v519 = vsel %vm294, %v287, 0.0
      %v520 = vadd.f32 %v286, %v519
      %521 = vadd.xlane.f32.xlu0 %v520
      %v522 = vpop.xlane.xlu0 %521
      %v523 = vsel %vm294, %v289, 0.0
      %v524 = vadd.f32 %v288, %v523
      %525 = vadd.xlane.f32.xlu0 %v524
      %v526 = vpop.xlane.xlu0 %525
      %v527 = vsel %vm294, %v291, 0.0
      %v528 = vadd.f32 %v290, %v527
      %529 = vadd.xlane.f32.xlu0 %v528
      %v530 = vpop.xlane.xlu0 %529
      %v531 = vsel %vm294, %v293, 0.0
      %v532 = vadd.f32 %v292, %v531
      %533 = vadd.xlane.f32.xlu0 %v532
      %v534 = vpop.xlane.xlu0 %533
      %v535 = vmul.f32 %v174, %v174
      %v536 = vmul.f32 %v175, %v175
      %v537 = vmul.f32 %v176, %v176
      %v538 = vmul.f32 %v177, %v177
      %v539 = vmul.f32 %v178, %v178
      %v540 = vmul.f32 %v179, %v179
      %v541 = vmul.f32 %v180, %v180
      %v542 = vmul.f32 %v181, %v181
      %v543 = vmul.f32 %v182, %v182
      %v544 = vmul.f32 %v183, %v183
      %v545 = vmul.f32 %v184, %v184
      %v546 = vmul.f32 %v185, %v185
      %v547 = vmul.f32 %v186, %v186
      %v548 = vmul.f32 %v187, %v187
      %v549 = vmul.f32 %v188, %v188
      %v550 = vmul.f32 %v189, %v189
      %v551 = vmul.f32 %v190, %v190
      %v552 = vmul.f32 %v191, %v191
      %v553 = vmul.f32 %v192, %v192
      %v554 = vmul.f32 %v193, %v193
      %v555 = vmul.f32 %v194, %v194
      %v556 = vmul.f32 %v195, %v195
      %v557 = vmul.f32 %v196, %v196
      %v558 = vmul.f32 %v197, %v197
      %v559 = vmul.f32 %v198, %v198
      %v560 = vmul.f32 %v199, %v199
      %v561 = vmul.f32 %v200, %v200
      %v562 = vmul.f32 %v201, %v201
      %v563 = vmul.f32 %v202, %v202
      %v564 = vmul.f32 %v203, %v203
      %v565 = vmul.f32 %v204, %v204
      %v566 = vmul.f32 %v205, %v205
      %v567 = vmul.f32 %v206, %v206
      %v568 = vmul.f32 %v207, %v207
      %v569 = vmul.f32 %v208, %v208
      %v570 = vmul.f32 %v209, %v209
      %v571 = vmul.f32 %v210, %v210
      %v572 = vmul.f32 %v211, %v211
      %v573 = vmul.f32 %v212, %v212
      %v574 = vmul.f32 %v213, %v213
      %v575 = vmul.f32 %v214, %v214
      %v576 = vmul.f32 %v215, %v215
      %v577 = vmul.f32 %v216, %v216
      %v578 = vmul.f32 %v217, %v217
      %v579 = vmul.f32 %v218, %v218
      %v580 = vmul.f32 %v219, %v219
      %v581 = vmul.f32 %v220, %v220
      %v582 = vmul.f32 %v221, %v221
      %v583 = vmul.f32 %v222, %v222
      %v584 = vmul.f32 %v223, %v223
      %v585 = vmul.f32 %v224, %v224
      %v586 = vmul.f32 %v225, %v225
      %v587 = vmul.f32 %v226, %v226
      %v588 = vmul.f32 %v227, %v227
      %v589 = vmul.f32 %v228, %v228
      %v590 = vmul.f32 %v229, %v229
      %v591 = vmul.f32 %v230, %v230
      %v592 = vmul.f32 %v231, %v231
      %v593 = vmul.f32 %v232, %v232
      %v594 = vmul.f32 %v233, %v233
      %v595 = vmul.f32 %v234, %v234
      %v596 = vmul.f32 %v235, %v235
      %v597 = vmul.f32 %v236, %v236
      %v598 = vmul.f32 %v237, %v237
      %v599 = vmul.f32 %v238, %v238
      %v600 = vmul.f32 %v239, %v239
      %v601 = vmul.f32 %v240, %v240
      %v602 = vmul.f32 %v241, %v241
      %v603 = vmul.f32 %v242, %v242
      %v604 = vmul.f32 %v243, %v243
      %v605 = vmul.f32 %v244, %v244
      %v606 = vmul.f32 %v245, %v245
      %v607 = vmul.f32 %v246, %v246
      %v608 = vmul.f32 %v247, %v247
      %v609 = vmul.f32 %v248, %v248
      %v610 = vmul.f32 %v249, %v249
      %v611 = vmul.f32 %v250, %v250
      %v612 = vmul.f32 %v251, %v251
      %v613 = vmul.f32 %v252, %v252
      %v614 = vmul.f32 %v253, %v253
      %v615 = vmul.f32 %v254, %v254
      %v616 = vmul.f32 %v255, %v255
      %v617 = vmul.f32 %v256, %v256
      %v618 = vmul.f32 %v257, %v257
      %v619 = vmul.f32 %v258, %v258
      %v620 = vmul.f32 %v259, %v259
      %v621 = vmul.f32 %v260, %v260
      %v622 = vmul.f32 %v261, %v261
      %v623 = vmul.f32 %v262, %v262
      %v624 = vmul.f32 %v263, %v263
      %v625 = vmul.f32 %v264, %v264
      %v626 = vmul.f32 %v265, %v265
      %v627 = vmul.f32 %v266, %v266
      %v628 = vmul.f32 %v267, %v267
      %v629 = vmul.f32 %v268, %v268
      %v630 = vmul.f32 %v269, %v269
      %v631 = vmul.f32 %v270, %v270
      %v632 = vmul.f32 %v271, %v271
      %v633 = vmul.f32 %v272, %v272
      %v634 = vmul.f32 %v273, %v273
      %v635 = vmul.f32 %v274, %v274
      %v636 = vmul.f32 %v275, %v275
      %v637 = vmul.f32 %v276, %v276
      %v638 = vmul.f32 %v277, %v277
      %v639 = vmul.f32 %v278, %v278
      %v640 = vmul.f32 %v279, %v279
      %v641 = vmul.f32 %v280, %v280
      %v642 = vmul.f32 %v281, %v281
      %v643 = vmul.f32 %v282, %v282
      %v644 = vmul.f32 %v283, %v283
      %v645 = vmul.f32 %v284, %v284
      %v646 = vmul.f32 %v285, %v285
      %v647 = vmul.f32 %v286, %v286
      %v648 = vmul.f32 %v287, %v287
      %v649 = vmul.f32 %v288, %v288
      %v650 = vmul.f32 %v289, %v289
      %v651 = vmul.f32 %v290, %v290
      %v652 = vmul.f32 %v291, %v291
      %v653 = vmul.f32 %v292, %v292
      %v654 = vmul.f32 %v293, %v293
      %v655 = vsel %vm294, %v536, 0.0
      %v656 = vadd.f32 %v535, %v655
      %657 = vadd.xlane.f32.xlu0 %v656
      %v658 = vpop.xlane.xlu0 %657
      %v659 = vsel %vm294, %v538, 0.0
      %v660 = vadd.f32 %v537, %v659
      %661 = vadd.xlane.f32.xlu0 %v660
      %v662 = vpop.xlane.xlu0 %661
      %v663 = vsel %vm294, %v540, 0.0
      %v664 = vadd.f32 %v539, %v663
      %665 = vadd.xlane.f32.xlu0 %v664
      %v666 = vpop.xlane.xlu0 %665
      %v667 = vsel %vm294, %v542, 0.0
      %v668 = vadd.f32 %v541, %v667
      %669 = vadd.xlane.f32.xlu0 %v668
      %v670 = vpop.xlane.xlu0 %669
      %v671 = vsel %vm294, %v544, 0.0
      %v672 = vadd.f32 %v543, %v671
      %673 = vadd.xlane.f32.xlu0 %v672
      %v674 = vpop.xlane.xlu0 %673
      %v675 = vsel %vm294, %v546, 0.0
      %v676 = vadd.f32 %v545, %v675
      %677 = vadd.xlane.f32.xlu0 %v676
      %v678 = vpop.xlane.xlu0 %677
      %v679 = vsel %vm294, %v548, 0.0
      %v680 = vadd.f32 %v547, %v679
      %681 = vadd.xlane.f32.xlu0 %v680
      %v682 = vpop.xlane.xlu0 %681
      %v683 = vsel %vm294, %v550, 0.0
      %v684 = vadd.f32 %v549, %v683
      %685 = vadd.xlane.f32.xlu0 %v684
      %v686 = vpop.xlane.xlu0 %685
      %v687 = vsel %vm294, %v552, 0.0
      %v688 = vadd.f32 %v551, %v687
      %689 = vadd.xlane.f32.xlu0 %v688
      %v690 = vpop.xlane.xlu0 %689
      %v691 = vsel %vm294, %v554, 0.0
      %v692 = vadd.f32 %v553, %v691
      %693 = vadd.xlane.f32.xlu0 %v692
      %v694 = vpop.xlane.xlu0 %693
      %v695 = vsel %vm294, %v556, 0.0
      %v696 = vadd.f32 %v555, %v695
      %697 = vadd.xlane.f32.xlu0 %v696
      %v698 = vpop.xlane.xlu0 %697
      %v699 = vsel %vm294, %v558, 0.0
      %v700 = vadd.f32 %v557, %v699
      %701 = vadd.xlane.f32.xlu0 %v700
      %v702 = vpop.xlane.xlu0 %701
      %v703 = vsel %vm294, %v560, 0.0
      %v704 = vadd.f32 %v559, %v703
      %705 = vadd.xlane.f32.xlu0 %v704
      %v706 = vpop.xlane.xlu0 %705
      %v707 = vsel %vm294, %v562, 0.0
      %v708 = vadd.f32 %v561, %v707
      %709 = vadd.xlane.f32.xlu0 %v708
      %v710 = vpop.xlane.xlu0 %709
      %v711 = vsel %vm294, %v564, 0.0
      %v712 = vadd.f32 %v563, %v711
      %713 = vadd.xlane.f32.xlu0 %v712
      %v714 = vpop.xlane.xlu0 %713
      %v715 = vsel %vm294, %v566, 0.0
      %v716 = vadd.f32 %v565, %v715
      %717 = vadd.xlane.f32.xlu0 %v716
      %v718 = vpop.xlane.xlu0 %717
      %v719 = vsel %vm294, %v568, 0.0
      %v720 = vadd.f32 %v567, %v719
      %721 = vadd.xlane.f32.xlu0 %v720
      %v722 = vpop.xlane.xlu0 %721
      %v723 = vsel %vm294, %v570, 0.0
      %v724 = vadd.f32 %v569, %v723
      %725 = vadd.xlane.f32.xlu0 %v724
      %v726 = vpop.xlane.xlu0 %725
      %v727 = vsel %vm294, %v572, 0.0
      %v728 = vadd.f32 %v571, %v727
      %729 = vadd.xlane.f32.xlu0 %v728
      %v730 = vpop.xlane.xlu0 %729
      %v731 = vsel %vm294, %v574, 0.0
      %v732 = vadd.f32 %v573, %v731
      %733 = vadd.xlane.f32.xlu0 %v732
      %v734 = vpop.xlane.xlu0 %733
      %v735 = vsel %vm294, %v576, 0.0
      %v736 = vadd.f32 %v575, %v735
      %737 = vadd.xlane.f32.xlu0 %v736
      %v738 = vpop.xlane.xlu0 %737
      %v739 = vsel %vm294, %v578, 0.0
      %v740 = vadd.f32 %v577, %v739
      %741 = vadd.xlane.f32.xlu0 %v740
      %v742 = vpop.xlane.xlu0 %741
      %v743 = vsel %vm294, %v580, 0.0
      %v744 = vadd.f32 %v579, %v743
      %745 = vadd.xlane.f32.xlu0 %v744
      %v746 = vpop.xlane.xlu0 %745
      %v747 = vsel %vm294, %v582, 0.0
      %v748 = vadd.f32 %v581, %v747
      %749 = vadd.xlane.f32.xlu0 %v748
      %v750 = vpop.xlane.xlu0 %749
      %v751 = vsel %vm294, %v584, 0.0
      %v752 = vadd.f32 %v583, %v751
      %753 = vadd.xlane.f32.xlu0 %v752
      %v754 = vpop.xlane.xlu0 %753
      %v755 = vsel %vm294, %v586, 0.0
      %v756 = vadd.f32 %v585, %v755
      %757 = vadd.xlane.f32.xlu0 %v756
      %v758 = vpop.xlane.xlu0 %757
      %v759 = vsel %vm294, %v588, 0.0
      %v760 = vadd.f32 %v587, %v759
      %761 = vadd.xlane.f32.xlu0 %v760
      %v762 = vpop.xlane.xlu0 %761
      %v763 = vsel %vm294, %v590, 0.0
      %v764 = vadd.f32 %v589, %v763
      %765 = vadd.xlane.f32.xlu0 %v764
      %v766 = vpop.xlane.xlu0 %765
      %v767 = vsel %vm294, %v592, 0.0
      %v768 = vadd.f32 %v591, %v767
      %769 = vadd.xlane.f32.xlu0 %v768
      %v770 = vpop.xlane.xlu0 %769
      %v771 = vsel %vm294, %v594, 0.0
      %v772 = vadd.f32 %v593, %v771
      %773 = vadd.xlane.f32.xlu0 %v772
      %v774 = vpop.xlane.xlu0 %773
      %v775 = vsel %vm294, %v596, 0.0
      %v776 = vadd.f32 %v595, %v775
      %777 = vadd.xlane.f32.xlu0 %v776
      %v778 = vpop.xlane.xlu0 %777
      %v779 = vsel %vm294, %v598, 0.0
      %v780 = vadd.f32 %v597, %v779
      %781 = vadd.xlane.f32.xlu0 %v780
      %v782 = vpop.xlane.xlu0 %781
      %v783 = vsel %vm294, %v600, 0.0
      %v784 = vadd.f32 %v599, %v783
      %785 = vadd.xlane.f32.xlu0 %v784
      %v786 = vpop.xlane.xlu0 %785
      %v787 = vsel %vm294, %v602, 0.0
      %v788 = vadd.f32 %v601, %v787
      %789 = vadd.xlane.f32.xlu0 %v788
      %v790 = vpop.xlane.xlu0 %789
      %v791 = vsel %vm294, %v604, 0.0
      %v792 = vadd.f32 %v603, %v791
      %793 = vadd.xlane.f32.xlu0 %v792
      %v794 = vpop.xlane.xlu0 %793
      %v795 = vsel %vm294, %v606, 0.0
      %v796 = vadd.f32 %v605, %v795
      %797 = vadd.xlane.f32.xlu0 %v796
      %v798 = vpop.xlane.xlu0 %797
      %v799 = vsel %vm294, %v608, 0.0
      %v800 = vadd.f32 %v607, %v799
      %801 = vadd.xlane.f32.xlu0 %v800
      %v802 = vpop.xlane.xlu0 %801
      %v803 = vsel %vm294, %v610, 0.0
      %v804 = vadd.f32 %v609, %v803
      %805 = vadd.xlane.f32.xlu0 %v804
      %v806 = vpop.xlane.xlu0 %805
      %v807 = vsel %vm294, %v612, 0.0
      %v808 = vadd.f32 %v611, %v807
      %809 = vadd.xlane.f32.xlu0 %v808
      %v810 = vpop.xlane.xlu0 %809
      %v811 = vsel %vm294, %v614, 0.0
      %v812 = vadd.f32 %v613, %v811
      %813 = vadd.xlane.f32.xlu0 %v812
      %v814 = vpop.xlane.xlu0 %813
      %v815 = vsel %vm294, %v616, 0.0
      %v816 = vadd.f32 %v615, %v815
      %817 = vadd.xlane.f32.xlu0 %v816
      %v818 = vpop.xlane.xlu0 %817
      %v819 = vsel %vm294, %v618, 0.0
      %v820 = vadd.f32 %v617, %v819
      %821 = vadd.xlane.f32.xlu0 %v820
      %v822 = vpop.xlane.xlu0 %821
      %v823 = vsel %vm294, %v620, 0.0
      %v824 = vadd.f32 %v619, %v823
      %825 = vadd.xlane.f32.xlu0 %v824
      %v826 = vpop.xlane.xlu0 %825
      %v827 = vsel %vm294, %v622, 0.0
      %v828 = vadd.f32 %v621, %v827
      %829 = vadd.xlane.f32.xlu0 %v828
      %v830 = vpop.xlane.xlu0 %829
      %v831 = vsel %vm294, %v624, 0.0
      %v832 = vadd.f32 %v623, %v831
      %833 = vadd.xlane.f32.xlu0 %v832
      %v834 = vpop.xlane.xlu0 %833
      %v835 = vsel %vm294, %v626, 0.0
      %v836 = vadd.f32 %v625, %v835
      %837 = vadd.xlane.f32.xlu0 %v836
      %v838 = vpop.xlane.xlu0 %837
      %v839 = vsel %vm294, %v628, 0.0
      %v840 = vadd.f32 %v627, %v839
      %841 = vadd.xlane.f32.xlu0 %v840
      %v842 = vpop.xlane.xlu0 %841
      %v843 = vsel %vm294, %v630, 0.0
      %v844 = vadd.f32 %v629, %v843
      %845 = vadd.xlane.f32.xlu0 %v844
      %v846 = vpop.xlane.xlu0 %845
      %v847 = vsel %vm294, %v632, 0.0
      %v848 = vadd.f32 %v631, %v847
      %849 = vadd.xlane.f32.xlu0 %v848
      %v850 = vpop.xlane.xlu0 %849
      %v851 = vsel %vm294, %v634, 0.0
      %v852 = vadd.f32 %v633, %v851
      %853 = vadd.xlane.f32.xlu0 %v852
      %v854 = vpop.xlane.xlu0 %853
      %v855 = vsel %vm294, %v636, 0.0
      %v856 = vadd.f32 %v635, %v855
      %857 = vadd.xlane.f32.xlu0 %v856
      %v858 = vpop.xlane.xlu0 %857
      %v859 = vsel %vm294, %v638, 0.0
      %v860 = vadd.f32 %v637, %v859
      %861 = vadd.xlane.f32.xlu0 %v860
      %v862 = vpop.xlane.xlu0 %861
      %v863 = vsel %vm294, %v640, 0.0
      %v864 = vadd.f32 %v639, %v863
      %865 = vadd.xlane.f32.xlu0 %v864
      %v866 = vpop.xlane.xlu0 %865
      %v867 = vsel %vm294, %v642, 0.0
      %v868 = vadd.f32 %v641, %v867
      %869 = vadd.xlane.f32.xlu0 %v868
      %v870 = vpop.xlane.xlu0 %869
      %v871 = vsel %vm294, %v644, 0.0
      %v872 = vadd.f32 %v643, %v871
      %873 = vadd.xlane.f32.xlu0 %v872
      %v874 = vpop.xlane.xlu0 %873
      %v875 = vsel %vm294, %v646, 0.0
      %v876 = vadd.f32 %v645, %v875
      %877 = vadd.xlane.f32.xlu0 %v876
      %v878 = vpop.xlane.xlu0 %877
      %v879 = vsel %vm294, %v648, 0.0
      %v880 = vadd.f32 %v647, %v879
      %881 = vadd.xlane.f32.xlu0 %v880
      %v882 = vpop.xlane.xlu0 %881
      %v883 = vsel %vm294, %v650, 0.0
      %v884 = vadd.f32 %v649, %v883
      %885 = vadd.xlane.f32.xlu0 %v884
      %v886 = vpop.xlane.xlu0 %885
      %v887 = vsel %vm294, %v652, 0.0
      %v888 = vadd.f32 %v651, %v887
      %889 = vadd.xlane.f32.xlu0 %v888
      %v890 = vpop.xlane.xlu0 %889
      %v891 = vsel %vm294, %v654, 0.0
      %v892 = vadd.f32 %v653, %v891
      %893 = vadd.xlane.f32.xlu0 %v892
      %v894 = vpop.xlane.xlu0 %893
      %v895 = vmul.f32 %v298, 0.0051020407
      %v896 = vmul.f32 %v302, 0.0051020407
      %v897 = vmul.f32 %v306, 0.0051020407
      %v898 = vmul.f32 %v310, 0.0051020407
      %v899 = vmul.f32 %v314, 0.0051020407
      %v900 = vmul.f32 %v318, 0.0051020407
      %v901 = vmul.f32 %v322, 0.0051020407
      %v902 = vmul.f32 %v326, 0.0051020407
      %v903 = vmul.f32 %v330, 0.0051020407
      %v904 = vmul.f32 %v334, 0.0051020407
      %v905 = vmul.f32 %v338, 0.0051020407
      %v906 = vmul.f32 %v342, 0.0051020407
      %v907 = vmul.f32 %v346, 0.0051020407
      %v908 = vmul.f32 %v350, 0.0051020407
      %v909 = vmul.f32 %v354, 0.0051020407
      %v910 = vmul.f32 %v358, 0.0051020407
      %v911 = vmul.f32 %v362, 0.0051020407
      %v912 = vmul.f32 %v366, 0.0051020407
      %v913 = vmul.f32 %v370, 0.0051020407
      %v914 = vmul.f32 %v374, 0.0051020407
      %v915 = vmul.f32 %v378, 0.0051020407
      %v916 = vmul.f32 %v382, 0.0051020407
      %v917 = vmul.f32 %v386, 0.0051020407
      %v918 = vmul.f32 %v390, 0.0051020407
      %v919 = vmul.f32 %v394, 0.0051020407
      %v920 = vmul.f32 %v398, 0.0051020407
      %v921 = vmul.f32 %v402, 0.0051020407
      %v922 = vmul.f32 %v406, 0.0051020407
      %v923 = vmul.f32 %v410, 0.0051020407
      %v924 = vmul.f32 %v414, 0.0051020407
      %v925 = vmul.f32 %v418, 0.0051020407
      %v926 = vmul.f32 %v422, 0.0051020407
      %v927 = vmul.f32 %v426, 0.0051020407
      %v928 = vmul.f32 %v430, 0.0051020407
      %v929 = vmul.f32 %v434, 0.0051020407
      %v930 = vmul.f32 %v438, 0.0051020407
      %v931 = vmul.f32 %v442, 0.0051020407
      %v932 = vmul.f32 %v446, 0.0051020407
      %v933 = vmul.f32 %v450, 0.0051020407
      %v934 = vmul.f32 %v454, 0.0051020407
      %v935 = vmul.f32 %v458, 0.0051020407
      %v936 = vmul.f32 %v462, 0.0051020407
      %v937 = vmul.f32 %v466, 0.0051020407
      %v938 = vmul.f32 %v470, 0.0051020407
      %v939 = vmul.f32 %v474, 0.0051020407
      %v940 = vmul.f32 %v478, 0.0051020407
      %v941 = vmul.f32 %v482, 0.0051020407
      %v942 = vmul.f32 %v486, 0.0051020407
      %v943 = vmul.f32 %v490, 0.0051020407
      %v944 = vmul.f32 %v494, 0.0051020407
      %v945 = vmul.f32 %v498, 0.0051020407
      %v946 = vmul.f32 %v502, 0.0051020407
      %v947 = vmul.f32 %v506, 0.0051020407
      %v948 = vmul.f32 %v510, 0.0051020407
      %v949 = vmul.f32 %v514, 0.0051020407
      %v950 = vmul.f32 %v518, 0.0051020407
      %v951 = vmul.f32 %v522, 0.0051020407
      %v952 = vmul.f32 %v526, 0.0051020407
      %v953 = vmul.f32 %v530, 0.0051020407
      %v954 = vmul.f32 %v534, 0.0051020407
      %v955 = vmul.f32 %v658, 0.0051020407
      %v956 = vmul.f32 %v662, 0.0051020407
      %v957 = vmul.f32 %v666, 0.0051020407
      %v958 = vmul.f32 %v670, 0.0051020407
      %v959 = vmul.f32 %v674, 0.0051020407
      %v960 = vmul.f32 %v678, 0.0051020407
      %v961 = vmul.f32 %v682, 0.0051020407
      %v962 = vmul.f32 %v686, 0.0051020407
      %v963 = vmul.f32 %v690, 0.0051020407
      %v964 = vmul.f32 %v694, 0.0051020407
      %v965 = vmul.f32 %v698, 0.0051020407
      %v966 = vmul.f32 %v702, 0.0051020407
      %v967 = vmul.f32 %v706, 0.0051020407
      %v968 = vmul.f32 %v710, 0.0051020407
      %v969 = vmul.f32 %v714, 0.0051020407
      %v970 = vmul.f32 %v718, 0.0051020407
      %v971 = vmul.f32 %v722, 0.0051020407
      %v972 = vmul.f32 %v726, 0.0051020407
      %v973 = vmul.f32 %v730, 0.0051020407
      %v974 = vmul.f32 %v734, 0.0051020407
      %v975 = vmul.f32 %v738, 0.0051020407
      %v976 = vmul.f32 %v742, 0.0051020407
      %v977 = vmul.f32 %v746, 0.0051020407
      %v978 = vmul.f32 %v750, 0.0051020407
      %v979 = vmul.f32 %v754, 0.0051020407
      %v980 = vmul.f32 %v758, 0.0051020407
      %v981 = vmul.f32 %v762, 0.0051020407
      %v982 = vmul.f32 %v766, 0.0051020407
      %v983 = vmul.f32 %v770, 0.0051020407
      %v984 = vmul.f32 %v774, 0.0051020407
      %v985 = vmul.f32 %v778, 0.0051020407
      %v986 = vmul.f32 %v782, 0.0051020407
      %v987 = vmul.f32 %v786, 0.0051020407
      %v988 = vmul.f32 %v790, 0.0051020407
      %v989 = vmul.f32 %v794, 0.0051020407
      %v990 = vmul.f32 %v798, 0.0051020407
      %v991 = vmul.f32 %v802, 0.0051020407
      %v992 = vmul.f32 %v806, 0.0051020407
      %v993 = vmul.f32 %v810, 0.0051020407
      %v994 = vmul.f32 %v814, 0.0051020407
      %v995 = vmul.f32 %v818, 0.0051020407
      %v996 = vmul.f32 %v822, 0.0051020407
      %v997 = vmul.f32 %v826, 0.0051020407
      %v998 = vmul.f32 %v830, 0.0051020407
      %v999 = vmul.f32 %v834, 0.0051020407
      %v1000 = vmul.f32 %v838, 0.0051020407
      %v1001 = vmul.f32 %v842, 0.0051020407
      %v1002 = vmul.f32 %v846, 0.0051020407
      %v1003 = vmul.f32 %v850, 0.0051020407
      %v1004 = vmul.f32 %v854, 0.0051020407
      %v1005 = vmul.f32 %v858, 0.0051020407
      %v1006 = vmul.f32 %v862, 0.0051020407
      %v1007 = vmul.f32 %v866, 0.0051020407
      %v1008 = vmul.f32 %v870, 0.0051020407
      %v1009 = vmul.f32 %v874, 0.0051020407
      %v1010 = vmul.f32 %v878, 0.0051020407
      %v1011 = vmul.f32 %v882, 0.0051020407
      %v1012 = vmul.f32 %v886, 0.0051020407
      %v1013 = vmul.f32 %v890, 0.0051020407
      %v1014 = vmul.f32 %v894, 0.0051020407
      %v1015 = vmul.f32 %v895, %v895
      %v1016 = vmul.f32 %v896, %v896
      %v1017 = vmul.f32 %v897, %v897
      %v1018 = vmul.f32 %v898, %v898
      %v1019 = vmul.f32 %v899, %v899
      %v1020 = vmul.f32 %v900, %v900
      %v1021 = vmul.f32 %v901, %v901
      %v1022 = vmul.f32 %v902, %v902
      %v1023 = vmul.f32 %v903, %v903
      %v1024 = vmul.f32 %v904, %v904
      %v1025 = vmul.f32 %v905, %v905
      %v1026 = vmul.f32 %v906, %v906
      %v1027 = vmul.f32 %v907, %v907
      %v1028 = vmul.f32 %v908, %v908
      %v1029 = vmul.f32 %v909, %v909
      %v1030 = vmul.f32 %v910, %v910
      %v1031 = vmul.f32 %v911, %v911
      %v1032 = vmul.f32 %v912, %v912
      %v1033 = vmul.f32 %v913, %v913
      %v1034 = vmul.f32 %v914, %v914
      %v1035 = vmul.f32 %v915, %v915
      %v1036 = vmul.f32 %v916, %v916
      %v1037 = vmul.f32 %v917, %v917
      %v1038 = vmul.f32 %v918, %v918
      %v1039 = vmul.f32 %v919, %v919
      %v1040 = vmul.f32 %v920, %v920
      %v1041 = vmul.f32 %v921, %v921
      %v1042 = vmul.f32 %v922, %v922
      %v1043 = vmul.f32 %v923, %v923
      %v1044 = vmul.f32 %v924, %v924
      %v1045 = vmul.f32 %v925, %v925
      %v1046 = vmul.f32 %v926, %v926
      %v1047 = vmul.f32 %v927, %v927
      %v1048 = vmul.f32 %v928, %v928
      %v1049 = vmul.f32 %v929, %v929
      %v1050 = vmul.f32 %v930, %v930
      %v1051 = vmul.f32 %v931, %v931
      %v1052 = vmul.f32 %v932, %v932
      %v1053 = vmul.f32 %v933, %v933
      %v1054 = vmul.f32 %v934, %v934
      %v1055 = vmul.f32 %v935, %v935
      %v1056 = vmul.f32 %v936, %v936
      %v1057 = vmul.f32 %v937, %v937
      %v1058 = vmul.f32 %v938, %v938
      %v1059 = vmul.f32 %v939, %v939
      %v1060 = vmul.f32 %v940, %v940
      %v1061 = vmul.f32 %v941, %v941
      %v1062 = vmul.f32 %v942, %v942
      %v1063 = vmul.f32 %v943, %v943
      %v1064 = vmul.f32 %v944, %v944
      %v1065 = vmul.f32 %v945, %v945
      %v1066 = vmul.f32 %v946, %v946
      %v1067 = vmul.f32 %v947, %v947
      %v1068 = vmul.f32 %v948, %v948
      %v1069 = vmul.f32 %v949, %v949
      %v1070 = vmul.f32 %v950, %v950
      %v1071 = vmul.f32 %v951, %v951
      %v1072 = vmul.f32 %v952, %v952
      %v1073 = vmul.f32 %v953, %v953
      %v1074 = vmul.f32 %v954, %v954
      %v1075 = vsub.f32 %v955, %v1015
      %v1076 = vsub.f32 %v956, %v1016
      %v1077 = vsub.f32 %v957, %v1017
      %v1078 = vsub.f32 %v958, %v1018
      %v1079 = vsub.f32 %v959, %v1019
      %v1080 = vsub.f32 %v960, %v1020
      %v1081 = vsub.f32 %v961, %v1021
      %v1082 = vsub.f32 %v962, %v1022
      %v1083 = vsub.f32 %v963, %v1023
      %v1084 = vsub.f32 %v964, %v1024
      %v1085 = vsub.f32 %v965, %v1025
      %v1086 = vsub.f32 %v966, %v1026
      %v1087 = vsub.f32 %v967, %v1027
      %v1088 = vsub.f32 %v968, %v1028
      %v1089 = vsub.f32 %v969, %v1029
      %v1090 = vsub.f32 %v970, %v1030
      %v1091 = vsub.f32 %v971, %v1031
      %v1092 = vsub.f32 %v972, %v1032
      %v1093 = vsub.f32 %v973, %v1033
      %v1094 = vsub.f32 %v974, %v1034
      %v1095 = vsub.f32 %v975, %v1035
      %v1096 = vsub.f32 %v976, %v1036
      %v1097 = vsub.f32 %v977, %v1037
      %v1098 = vsub.f32 %v978, %v1038
      %v1099 = vsub.f32 %v979, %v1039
      %v1100 = vsub.f32 %v980, %v1040
      %v1101 = vsub.f32 %v981, %v1041
      %v1102 = vsub.f32 %v982, %v1042
      %v1103 = vsub.f32 %v983, %v1043
      %v1104 = vsub.f32 %v984, %v1044
      %v1105 = vsub.f32 %v985, %v1045
      %v1106 = vsub.f32 %v986, %v1046
      %v1107 = vsub.f32 %v987, %v1047
      %v1108 = vsub.f32 %v988, %v1048
      %v1109 = vsub.f32 %v989, %v1049
      %v1110 = vsub.f32 %v990, %v1050
      %v1111 = vsub.f32 %v991, %v1051
      %v1112 = vsub.f32 %v992, %v1052
      %v1113 = vsub.f32 %v993, %v1053
      %v1114 = vsub.f32 %v994, %v1054
      %v1115 = vsub.f32 %v995, %v1055
      %v1116 = vsub.f32 %v996, %v1056
      %v1117 = vsub.f32 %v997, %v1057
      %v1118 = vsub.f32 %v998, %v1058
      %v1119 = vsub.f32 %v999, %v1059
      %v1120 = vsub.f32 %v1000, %v1060
      %v1121 = vsub.f32 %v1001, %v1061
      %v1122 = vsub.f32 %v1002, %v1062
      %v1123 = vsub.f32 %v1003, %v1063
      %v1124 = vsub.f32 %v1004, %v1064
      %v1125 = vsub.f32 %v1005, %v1065
      %v1126 = vsub.f32 %v1006, %v1066
      %v1127 = vsub.f32 %v1007, %v1067
      %v1128 = vsub.f32 %v1008, %v1068
      %v1129 = vsub.f32 %v1009, %v1069
      %v1130 = vsub.f32 %v1010, %v1070
      %v1131 = vsub.f32 %v1011, %v1071
      %v1132 = vsub.f32 %v1012, %v1072
      %v1133 = vsub.f32 %v1013, %v1073
      %v1134 = vsub.f32 %v1014, %v1074
      %v1135 = vmax.f32 %v1075, 0.0
      %v1136 = vmax.f32 %v1076, 0.0
      %v1137 = vmax.f32 %v1077, 0.0
      %v1138 = vmax.f32 %v1078, 0.0
      %v1139 = vmax.f32 %v1079, 0.0
      %v1140 = vmax.f32 %v1080, 0.0
      %v1141 = vmax.f32 %v1081, 0.0
      %v1142 = vmax.f32 %v1082, 0.0
      %v1143 = vmax.f32 %v1083, 0.0
      %v1144 = vmax.f32 %v1084, 0.0
      %v1145 = vmax.f32 %v1085, 0.0
      %v1146 = vmax.f32 %v1086, 0.0
      %v1147 = vmax.f32 %v1087, 0.0
      %v1148 = vmax.f32 %v1088, 0.0
      %v1149 = vmax.f32 %v1089, 0.0
      %v1150 = vmax.f32 %v1090, 0.0
      %v1151 = vmax.f32 %v1091, 0.0
      %v1152 = vmax.f32 %v1092, 0.0
      %v1153 = vmax.f32 %v1093, 0.0
      %v1154 = vmax.f32 %v1094, 0.0
      %v1155 = vmax.f32 %v1095, 0.0
      %v1156 = vmax.f32 %v1096, 0.0
      %v1157 = vmax.f32 %v1097, 0.0
      %v1158 = vmax.f32 %v1098, 0.0
      %v1159 = vmax.f32 %v1099, 0.0
      %v1160 = vmax.f32 %v1100, 0.0
      %v1161 = vmax.f32 %v1101, 0.0
      %v1162 = vmax.f32 %v1102, 0.0
      %v1163 = vmax.f32 %v1103, 0.0
      %v1164 = vmax.f32 %v1104, 0.0
      %v1165 = vmax.f32 %v1105, 0.0
      %v1166 = vmax.f32 %v1106, 0.0
      %v1167 = vmax.f32 %v1107, 0.0
      %v1168 = vmax.f32 %v1108, 0.0
      %v1169 = vmax.f32 %v1109, 0.0
      %v1170 = vmax.f32 %v1110, 0.0
      %v1171 = vmax.f32 %v1111, 0.0
      %v1172 = vmax.f32 %v1112, 0.0
      %v1173 = vmax.f32 %v1113, 0.0
      %v1174 = vmax.f32 %v1114, 0.0
      %v1175 = vmax.f32 %v1115, 0.0
      %v1176 = vmax.f32 %v1116, 0.0
      %v1177 = vmax.f32 %v1117, 0.0
      %v1178 = vmax.f32 %v1118, 0.0
      %v1179 = vmax.f32 %v1119, 0.0
      %v1180 = vmax.f32 %v1120, 0.0
      %v1181 = vmax.f32 %v1121, 0.0
      %v1182 = vmax.f32 %v1122, 0.0
      %v1183 = vmax.f32 %v1123, 0.0
      %v1184 = vmax.f32 %v1124, 0.0
      %v1185 = vmax.f32 %v1125, 0.0
      %v1186 = vmax.f32 %v1126, 0.0
      %v1187 = vmax.f32 %v1127, 0.0
      %v1188 = vmax.f32 %v1128, 0.0
      %v1189 = vmax.f32 %v1129, 0.0
      %v1190 = vmax.f32 %v1130, 0.0
      %v1191 = vmax.f32 %v1131, 0.0
      %v1192 = vmax.f32 %v1132, 0.0
      %v1193 = vmax.f32 %v1133, 0.0
      %v1194 = vmax.f32 %v1134, 0.0
      %v1195 = vadd.f32 %v1135, 0.001
      %v1196 = vadd.f32 %v1136, 0.001
      %v1197 = vadd.f32 %v1137, 0.001
      %v1198 = vadd.f32 %v1138, 0.001
      %v1199 = vadd.f32 %v1139, 0.001
      %v1200 = vadd.f32 %v1140, 0.001
      %v1201 = vadd.f32 %v1141, 0.001
      %v1202 = vadd.f32 %v1142, 0.001
      %v1203 = vadd.f32 %v1143, 0.001
      %v1204 = vadd.f32 %v1144, 0.001
      %v1205 = vadd.f32 %v1145, 0.001
      %v1206 = vadd.f32 %v1146, 0.001
      %v1207 = vadd.f32 %v1147, 0.001
      %v1208 = vadd.f32 %v1148, 0.001
      %v1209 = vadd.f32 %v1149, 0.001
      %v1210 = vadd.f32 %v1150, 0.001
      %v1211 = vadd.f32 %v1151, 0.001
      %v1212 = vadd.f32 %v1152, 0.001
      %v1213 = vadd.f32 %v1153, 0.001
      %v1214 = vadd.f32 %v1154, 0.001
      %v1215 = vadd.f32 %v1155, 0.001
      %v1216 = vadd.f32 %v1156, 0.001
      %v1217 = vadd.f32 %v1157, 0.001
      %v1218 = vadd.f32 %v1158, 0.001
      %v1219 = vadd.f32 %v1159, 0.001
      %v1220 = vadd.f32 %v1160, 0.001
      %v1221 = vadd.f32 %v1161, 0.001
      %v1222 = vadd.f32 %v1162, 0.001
      %v1223 = vadd.f32 %v1163, 0.001
      %v1224 = vadd.f32 %v1164, 0.001
      %v1225 = vadd.f32 %v1165, 0.001
      %v1226 = vadd.f32 %v1166, 0.001
      %v1227 = vadd.f32 %v1167, 0.001
      %v1228 = vadd.f32 %v1168, 0.001
      %v1229 = vadd.f32 %v1169, 0.001
      %v1230 = vadd.f32 %v1170, 0.001
      %v1231 = vadd.f32 %v1171, 0.001
      %v1232 = vadd.f32 %v1172, 0.001
      %v1233 = vadd.f32 %v1173, 0.001
      %v1234 = vadd.f32 %v1174, 0.001
      %v1235 = vadd.f32 %v1175, 0.001
      %v1236 = vadd.f32 %v1176, 0.001
      %v1237 = vadd.f32 %v1177, 0.001
      %v1238 = vadd.f32 %v1178, 0.001
      %v1239 = vadd.f32 %v1179, 0.001
      %v1240 = vadd.f32 %v1180, 0.001
      %v1241 = vadd.f32 %v1181, 0.001
      %v1242 = vadd.f32 %v1182, 0.001
      %v1243 = vadd.f32 %v1183, 0.001
      %v1244 = vadd.f32 %v1184, 0.001
      %v1245 = vadd.f32 %v1185, 0.001
      %v1246 = vadd.f32 %v1186, 0.001
      %v1247 = vadd.f32 %v1187, 0.001
      %v1248 = vadd.f32 %v1188, 0.001
      %v1249 = vadd.f32 %v1189, 0.001
      %v1250 = vadd.f32 %v1190, 0.001
      %v1251 = vadd.f32 %v1191, 0.001
      %v1252 = vadd.f32 %v1192, 0.001
      %v1253 = vadd.f32 %v1193, 0.001
      %v1254 = vadd.f32 %v1194, 0.001
      %v1255 = vrsqrt.pop %v1195
      %v1256 = vrsqrt.pop %v1196
      %v1257 = vrsqrt.pop %v1197
      %v1258 = vrsqrt.pop %v1198
      %v1259 = vrsqrt.pop %v1199
      %v1260 = vrsqrt.pop %v1200
      %v1261 = vrsqrt.pop %v1201
      %v1262 = vrsqrt.pop %v1202
      %v1263 = vrsqrt.pop %v1203
      %v1264 = vrsqrt.pop %v1204
      %v1265 = vrsqrt.pop %v1205
      %v1266 = vrsqrt.pop %v1206
      %v1267 = vrsqrt.pop %v1207
      %v1268 = vrsqrt.pop %v1208
      %v1269 = vrsqrt.pop %v1209
      %v1270 = vrsqrt.pop %v1210
      %v1271 = vrsqrt.pop %v1211
      %v1272 = vrsqrt.pop %v1212
      %v1273 = vrsqrt.pop %v1213
      %v1274 = vrsqrt.pop %v1214
      %v1275 = vrsqrt.pop %v1215
      %v1276 = vrsqrt.pop %v1216
      %v1277 = vrsqrt.pop %v1217
      %v1278 = vrsqrt.pop %v1218
      %v1279 = vrsqrt.pop %v1219
      %v1280 = vrsqrt.pop %v1220
      %v1281 = vrsqrt.pop %v1221
      %v1282 = vrsqrt.pop %v1222
      %v1283 = vrsqrt.pop %v1223
      %v1284 = vrsqrt.pop %v1224
      %v1285 = vrsqrt.pop %v1225
      %v1286 = vrsqrt.pop %v1226
      %v1287 = vrsqrt.pop %v1227
      %v1288 = vrsqrt.pop %v1228
      %v1289 = vrsqrt.pop %v1229
      %v1290 = vrsqrt.pop %v1230
      %v1291 = vrsqrt.pop %v1231
      %v1292 = vrsqrt.pop %v1232
      %v1293 = vrsqrt.pop %v1233
      %v1294 = vrsqrt.pop %v1234
      %v1295 = vrsqrt.pop %v1235
      %v1296 = vrsqrt.pop %v1236
      %v1297 = vrsqrt.pop %v1237
      %v1298 = vrsqrt.pop %v1238
      %v1299 = vrsqrt.pop %v1239
      %v1300 = vrsqrt.pop %v1240
      %v1301 = vrsqrt.pop %v1241
      %v1302 = vrsqrt.pop %v1242
      %v1303 = vrsqrt.pop %v1243
      %v1304 = vrsqrt.pop %v1244
      %v1305 = vrsqrt.pop %v1245
      %v1306 = vrsqrt.pop %v1246
      %v1307 = vrsqrt.pop %v1247
      %v1308 = vrsqrt.pop %v1248
      %v1309 = vrsqrt.pop %v1249
      %v1310 = vrsqrt.pop %v1250
      %v1311 = vrsqrt.pop %v1251
      %v1312 = vrsqrt.pop %v1252
      %v1313 = vrsqrt.pop %v1253
      %v1314 = vrsqrt.pop %v1254
      %v1315 = vld [vmem:[%s165] sm:$0xff]
      %v1316 = vld [vmem:[%s165 + $0x8] sm:$0xff]
      %v1317 = vld [vmem:[%s165 + $0x10] sm:$0xff]
      %v1318 = vld [vmem:[%s165 + $0x18] sm:$0xff]
      %v1319 = vld [vmem:[%s165 + $0x20] sm:$0xff]
      %v1320 = vld [vmem:[%s165 + $0x28] sm:$0xff]
      %v1321 = vld [vmem:[%s165 + $0x30] sm:$0xff]
      %v1322 = vld [vmem:[%s165 + $0x38] sm:$0xff]
      %v1323 = vld [vmem:[%s165 + $0x40] sm:$0xff]
      %v1324 = vld [vmem:[%s165 + $0x48] sm:$0xff]
      %v1325 = vld [vmem:[%s165 + $0x50] sm:$0xff]
      %v1326 = vld [vmem:[%s165 + $0x58] sm:$0xff]
      %v1327 = vld [vmem:[%s165 + $0x60] sm:$0xff]
      %v1328 = vld [vmem:[%s165 + $0x68] sm:$0xff]
      %v1329 = vld [vmem:[%s165 + $0x70] sm:$0xff]
      %v1330 = vld [vmem:[%s165 + $0x78] sm:$0xff]
      %v1331 = vld [vmem:[%s165 + $0x80] sm:$0xff]
      %v1332 = vld [vmem:[%s165 + $0x88] sm:$0xff]
      %v1333 = vld [vmem:[%s165 + $0x90] sm:$0xff]
      %v1334 = vld [vmem:[%s165 + $0x98] sm:$0xff]
      %v1335 = vld [vmem:[%s165 + $0xa0] sm:$0xff]
      %v1336 = vld [vmem:[%s165 + $0xa8] sm:$0xff]
      %v1337 = vld [vmem:[%s165 + $0xb0] sm:$0xff]
      %v1338 = vld [vmem:[%s165 + $0xb8] sm:$0xff]
      %v1339 = vld [vmem:[%s165 + $0xc0] sm:$0xff]
      %v1340 = vld [vmem:[%s165 + $0xc8] sm:$0xff]
      %v1341 = vld [vmem:[%s165 + $0xd0] sm:$0xff]
      %v1342 = vld [vmem:[%s165 + $0xd8] sm:$0xff]
      %v1343 = vld [vmem:[%s165 + $0xe0] sm:$0xff]
      %v1344 = vld [vmem:[%s165 + $0xe8] sm:$0xff]
      %v1345 = vld [vmem:[%s165 + $0xf0] sm:$0xff]
      %v1346 = vld [vmem:[%s165 + $0xf8] sm:$0xff]
      %v1347 = vld [vmem:[%s165 + $0x100] sm:$0xff]
      %v1348 = vld [vmem:[%s165 + $0x108] sm:$0xff]
      %v1349 = vld [vmem:[%s165 + $0x110] sm:$0xff]
      %v1350 = vld [vmem:[%s165 + $0x118] sm:$0xff]
      %v1351 = vld [vmem:[%s165 + $0x120] sm:$0xff]
      %v1352 = vld [vmem:[%s165 + $0x128] sm:$0xff]
      %v1353 = vld [vmem:[%s165 + $0x130] sm:$0xff]
      %v1354 = vld [vmem:[%s165 + $0x138] sm:$0xff]
      %v1355 = vld [vmem:[%s165 + $0x140] sm:$0xff]
      %v1356 = vld [vmem:[%s165 + $0x148] sm:$0xff]
      %v1357 = vld [vmem:[%s165 + $0x150] sm:$0xff]
      %v1358 = vld [vmem:[%s165 + $0x158] sm:$0xff]
      %v1359 = vld [vmem:[%s165 + $0x160] sm:$0xff]
      %v1360 = vld [vmem:[%s165 + $0x168] sm:$0xff]
      %v1361 = vld [vmem:[%s165 + $0x170] sm:$0xff]
      %v1362 = vld [vmem:[%s165 + $0x178] sm:$0xff]
      %v1363 = vld [vmem:[%s165 + $0x180] sm:$0xff]
      %v1364 = vld [vmem:[%s165 + $0x188] sm:$0xff]
      %v1365 = vld [vmem:[%s165 + $0x190] sm:$0xff]
      %v1366 = vld [vmem:[%s165 + $0x198] sm:$0xff]
      %v1367 = vld [vmem:[%s165 + $0x1a0] sm:$0xff]
      %v1368 = vld [vmem:[%s165 + $0x1a8] sm:$0xff]
      %v1369 = vld [vmem:[%s165 + $0x1b0] sm:$0xff]
      %v1370 = vld [vmem:[%s165 + $0x1b8] sm:$0xff]
      %v1371 = vld [vmem:[%s165 + $0x1c0] sm:$0xff]
      %v1372 = vld [vmem:[%s165 + $0x1c8] sm:$0xff]
      %v1373 = vld [vmem:[%s165 + $0x1d0] sm:$0xff]
      %v1374 = vld [vmem:[%s165 + $0x1d8] sm:$0xff]
      %v1375 = vmul.f32 %v1315, %v1255
      %v1376 = vmul.f32 %v1316, %v1256
      %v1377 = vmul.f32 %v1317, %v1257
      %v1378 = vmul.f32 %v1318, %v1258
      %v1379 = vmul.f32 %v1319, %v1259
      %v1380 = vmul.f32 %v1320, %v1260
      %v1381 = vmul.f32 %v1321, %v1261
      %v1382 = vmul.f32 %v1322, %v1262
      %v1383 = vmul.f32 %v1323, %v1263
      %v1384 = vmul.f32 %v1324, %v1264
      %v1385 = vmul.f32 %v1325, %v1265
      %v1386 = vmul.f32 %v1326, %v1266
      %v1387 = vmul.f32 %v1327, %v1267
      %v1388 = vmul.f32 %v1328, %v1268
      %v1389 = vmul.f32 %v1329, %v1269
      %v1390 = vmul.f32 %v1330, %v1270
      %v1391 = vmul.f32 %v1331, %v1271
      %v1392 = vmul.f32 %v1332, %v1272
      %v1393 = vmul.f32 %v1333, %v1273
      %v1394 = vmul.f32 %v1334, %v1274
      %v1395 = vmul.f32 %v1335, %v1275
      %v1396 = vmul.f32 %v1336, %v1276
      %v1397 = vmul.f32 %v1337, %v1277
      %v1398 = vmul.f32 %v1338, %v1278
      %v1399 = vmul.f32 %v1339, %v1279
      %v1400 = vmul.f32 %v1340, %v1280
      %v1401 = vmul.f32 %v1341, %v1281
      %v1402 = vmul.f32 %v1342, %v1282
      %v1403 = vmul.f32 %v1343, %v1283
      %v1404 = vmul.f32 %v1344, %v1284
      %v1405 = vmul.f32 %v1345, %v1285
      %v1406 = vmul.f32 %v1346, %v1286
      %v1407 = vmul.f32 %v1347, %v1287
      %v1408 = vmul.f32 %v1348, %v1288
      %v1409 = vmul.f32 %v1349, %v1289
      %v1410 = vmul.f32 %v1350, %v1290
      %v1411 = vmul.f32 %v1351, %v1291
      %v1412 = vmul.f32 %v1352, %v1292
      %v1413 = vmul.f32 %v1353, %v1293
      %v1414 = vmul.f32 %v1354, %v1294
      %v1415 = vmul.f32 %v1355, %v1295
      %v1416 = vmul.f32 %v1356, %v1296
      %v1417 = vmul.f32 %v1357, %v1297
      %v1418 = vmul.f32 %v1358, %v1298
      %v1419 = vmul.f32 %v1359, %v1299
      %v1420 = vmul.f32 %v1360, %v1300
      %v1421 = vmul.f32 %v1361, %v1301
      %v1422 = vmul.f32 %v1362, %v1302
      %v1423 = vmul.f32 %v1363, %v1303
      %v1424 = vmul.f32 %v1364, %v1304
      %v1425 = vmul.f32 %v1365, %v1305
      %v1426 = vmul.f32 %v1366, %v1306
      %v1427 = vmul.f32 %v1367, %v1307
      %v1428 = vmul.f32 %v1368, %v1308
      %v1429 = vmul.f32 %v1369, %v1309
      %v1430 = vmul.f32 %v1370, %v1310
      %v1431 = vmul.f32 %v1371, %v1311
      %v1432 = vmul.f32 %v1372, %v1312
      %v1433 = vmul.f32 %v1373, %v1313
      %v1434 = vmul.f32 %v1374, %v1314
      %v1435 = vmul.f32 %v895, %v1375
      %v1436 = vmul.f32 %v896, %v1376
      %v1437 = vmul.f32 %v897, %v1377
      %v1438 = vmul.f32 %v898, %v1378
      %v1439 = vmul.f32 %v899, %v1379
      %v1440 = vmul.f32 %v900, %v1380
      %v1441 = vmul.f32 %v901, %v1381
      %v1442 = vmul.f32 %v902, %v1382
      %v1443 = vmul.f32 %v903, %v1383
      %v1444 = vmul.f32 %v904, %v1384
      %v1445 = vmul.f32 %v905, %v1385
      %v1446 = vmul.f32 %v906, %v1386
      %v1447 = vmul.f32 %v907, %v1387
      %v1448 = vmul.f32 %v908, %v1388
      %v1449 = vmul.f32 %v909, %v1389
      %v1450 = vmul.f32 %v910, %v1390
      %v1451 = vmul.f32 %v911, %v1391
      %v1452 = vmul.f32 %v912, %v1392
      %v1453 = vmul.f32 %v913, %v1393
      %v1454 = vmul.f32 %v914, %v1394
      %v1455 = vmul.f32 %v915, %v1395
      %v1456 = vmul.f32 %v916, %v1396
      %v1457 = vmul.f32 %v917, %v1397
      %v1458 = vmul.f32 %v918, %v1398
      %v1459 = vmul.f32 %v919, %v1399
      %v1460 = vmul.f32 %v920, %v1400
      %v1461 = vmul.f32 %v921, %v1401
      %v1462 = vmul.f32 %v922, %v1402
      %v1463 = vmul.f32 %v923, %v1403
      %v1464 = vmul.f32 %v924, %v1404
      %v1465 = vmul.f32 %v925, %v1405
      %v1466 = vmul.f32 %v926, %v1406
      %v1467 = vmul.f32 %v927, %v1407
      %v1468 = vmul.f32 %v928, %v1408
      %v1469 = vmul.f32 %v929, %v1409
      %v1470 = vmul.f32 %v930, %v1410
      %v1471 = vmul.f32 %v931, %v1411
      %v1472 = vmul.f32 %v932, %v1412
      %v1473 = vmul.f32 %v933, %v1413
      %v1474 = vmul.f32 %v934, %v1414
      %v1475 = vmul.f32 %v935, %v1415
      %v1476 = vmul.f32 %v936, %v1416
      %v1477 = vmul.f32 %v937, %v1417
      %v1478 = vmul.f32 %v938, %v1418
      %v1479 = vmul.f32 %v939, %v1419
      %v1480 = vmul.f32 %v940, %v1420
      %v1481 = vmul.f32 %v941, %v1421
      %v1482 = vmul.f32 %v942, %v1422
      %v1483 = vmul.f32 %v943, %v1423
      %v1484 = vmul.f32 %v944, %v1424
      %v1485 = vmul.f32 %v945, %v1425
      %v1486 = vmul.f32 %v946, %v1426
      %v1487 = vmul.f32 %v947, %v1427
      %v1488 = vmul.f32 %v948, %v1428
      %v1489 = vmul.f32 %v949, %v1429
      %v1490 = vmul.f32 %v950, %v1430
      %v1491 = vmul.f32 %v951, %v1431
      %v1492 = vmul.f32 %v952, %v1432
      %v1493 = vmul.f32 %v953, %v1433
      %v1494 = vmul.f32 %v954, %v1434
      %1555 = vrot.lane.b32.xlu0 %v1435, 1
      %v1556 = vpop.permute.xlu0 %1555
      %1557 = vrot.lane.b32.xlu0 %v1436, 1
      %v1558 = vpop.permute.xlu0 %1557
      %1559 = vrot.lane.b32.xlu0 %v1437, 1
      %v1560 = vpop.permute.xlu0 %1559
      %1561 = vrot.lane.b32.xlu0 %v1438, 1
      %v1562 = vpop.permute.xlu0 %1561
      %1563 = vrot.lane.b32.xlu0 %v1439, 1
      %v1564 = vpop.permute.xlu0 %1563
      %1565 = vrot.lane.b32.xlu0 %v1440, 1
      %v1566 = vpop.permute.xlu0 %1565
      %1567 = vrot.lane.b32.xlu0 %v1441, 1
      %v1568 = vpop.permute.xlu0 %1567
      %1569 = vrot.lane.b32.xlu0 %v1442, 1
      %v1570 = vpop.permute.xlu0 %1569
      %1571 = vrot.lane.b32.xlu0 %v1443, 1
      %v1572 = vpop.permute.xlu0 %1571
      %1573 = vrot.lane.b32.xlu0 %v1444, 1
      %v1574 = vpop.permute.xlu0 %1573
      %1575 = vrot.lane.b32.xlu0 %v1445, 1
      %v1576 = vpop.permute.xlu0 %1575
      %1577 = vrot.lane.b32.xlu0 %v1446, 1
      %v1578 = vpop.permute.xlu0 %1577
      %1579 = vrot.lane.b32.xlu0 %v1447, 1
      %v1580 = vpop.permute.xlu0 %1579
      %1581 = vrot.lane.b32.xlu0 %v1448, 1
      %v1582 = vpop.permute.xlu0 %1581
      %1583 = vrot.lane.b32.xlu0 %v1449, 1
      %v1584 = vpop.permute.xlu0 %1583
      %1585 = vrot.lane.b32.xlu0 %v1450, 1
      %v1586 = vpop.permute.xlu0 %1585
      %1587 = vrot.lane.b32.xlu0 %v1451, 1
      %v1588 = vpop.permute.xlu0 %1587
      %1589 = vrot.lane.b32.xlu0 %v1452, 1
      %v1590 = vpop.permute.xlu0 %1589
      %1591 = vrot.lane.b32.xlu0 %v1453, 1
      %v1592 = vpop.permute.xlu0 %1591
      %1593 = vrot.lane.b32.xlu0 %v1454, 1
      %v1594 = vpop.permute.xlu0 %1593
      %1595 = vrot.lane.b32.xlu0 %v1455, 1
      %v1596 = vpop.permute.xlu0 %1595
      %1597 = vrot.lane.b32.xlu0 %v1456, 1
      %v1598 = vpop.permute.xlu0 %1597
      %1599 = vrot.lane.b32.xlu0 %v1457, 1
      %v1600 = vpop.permute.xlu0 %1599
      %1601 = vrot.lane.b32.xlu0 %v1458, 1
      %v1602 = vpop.permute.xlu0 %1601
      %1603 = vrot.lane.b32.xlu0 %v1459, 1
      %v1604 = vpop.permute.xlu0 %1603
      %1605 = vrot.lane.b32.xlu0 %v1460, 1
      %v1606 = vpop.permute.xlu0 %1605
      %1607 = vrot.lane.b32.xlu0 %v1461, 1
      %v1608 = vpop.permute.xlu0 %1607
      %1609 = vrot.lane.b32.xlu0 %v1462, 1
      %v1610 = vpop.permute.xlu0 %1609
      %1611 = vrot.lane.b32.xlu0 %v1463, 1
      %v1612 = vpop.permute.xlu0 %1611
      %1613 = vrot.lane.b32.xlu0 %v1464, 1
      %v1614 = vpop.permute.xlu0 %1613
      %1615 = vrot.lane.b32.xlu0 %v1465, 1
      %v1616 = vpop.permute.xlu0 %1615
      %1617 = vrot.lane.b32.xlu0 %v1466, 1
      %v1618 = vpop.permute.xlu0 %1617
      %1619 = vrot.lane.b32.xlu0 %v1467, 1
      %v1620 = vpop.permute.xlu0 %1619
      %1621 = vrot.lane.b32.xlu0 %v1468, 1
      %v1622 = vpop.permute.xlu0 %1621
      %1623 = vrot.lane.b32.xlu0 %v1469, 1
      %v1624 = vpop.permute.xlu0 %1623
      %1625 = vrot.lane.b32.xlu0 %v1470, 1
      %v1626 = vpop.permute.xlu0 %1625
      %1627 = vrot.lane.b32.xlu0 %v1471, 1
      %v1628 = vpop.permute.xlu0 %1627
      %1629 = vrot.lane.b32.xlu0 %v1472, 1
      %v1630 = vpop.permute.xlu0 %1629
      %1631 = vrot.lane.b32.xlu0 %v1473, 1
      %v1632 = vpop.permute.xlu0 %1631
      %1633 = vrot.lane.b32.xlu0 %v1474, 1
      %v1634 = vpop.permute.xlu0 %1633
      %1635 = vrot.lane.b32.xlu0 %v1475, 1
      %v1636 = vpop.permute.xlu0 %1635
      %1637 = vrot.lane.b32.xlu0 %v1476, 1
      %v1638 = vpop.permute.xlu0 %1637
      %1639 = vrot.lane.b32.xlu0 %v1477, 1
      %v1640 = vpop.permute.xlu0 %1639
      %1641 = vrot.lane.b32.xlu0 %v1478, 1
      %v1642 = vpop.permute.xlu0 %1641
      %1643 = vrot.lane.b32.xlu0 %v1479, 1
      %v1644 = vpop.permute.xlu0 %1643
      %1645 = vrot.lane.b32.xlu0 %v1480, 1
      %v1646 = vpop.permute.xlu0 %1645
      %1647 = vrot.lane.b32.xlu0 %v1481, 1
      %v1648 = vpop.permute.xlu0 %1647
      %1649 = vrot.lane.b32.xlu0 %v1482, 1
      %v1650 = vpop.permute.xlu0 %1649
      %1651 = vrot.lane.b32.xlu0 %v1483, 1
      %v1652 = vpop.permute.xlu0 %1651
      %1653 = vrot.lane.b32.xlu0 %v1484, 1
      %v1654 = vpop.permute.xlu0 %1653
      %1655 = vrot.lane.b32.xlu0 %v1485, 1
      %v1656 = vpop.permute.xlu0 %1655
      %1657 = vrot.lane.b32.xlu0 %v1486, 1
      %v1658 = vpop.permute.xlu0 %1657
      %1659 = vrot.lane.b32.xlu0 %v1487, 1
      %v1660 = vpop.permute.xlu0 %1659
      %1661 = vrot.lane.b32.xlu0 %v1488, 1
      %v1662 = vpop.permute.xlu0 %1661
      %1663 = vrot.lane.b32.xlu0 %v1489, 1
      %v1664 = vpop.permute.xlu0 %1663
      %1665 = vrot.lane.b32.xlu0 %v1490, 1
      %v1666 = vpop.permute.xlu0 %1665
      %1667 = vrot.lane.b32.xlu0 %v1491, 1
      %v1668 = vpop.permute.xlu0 %1667
      %1669 = vrot.lane.b32.xlu0 %v1492, 1
      %v1670 = vpop.permute.xlu0 %1669
      %1671 = vrot.lane.b32.xlu0 %v1493, 1
      %v1672 = vpop.permute.xlu0 %1671
      %1673 = vrot.lane.b32.xlu0 %v1494, 1
      %v1674 = vpop.permute.xlu0 %1673
      %v1735 = vsub.f32 %v1315, %v1556
      %v1736 = vsub.f32 %v1316, %v1558
      %v1737 = vsub.f32 %v1317, %v1560
      %v1738 = vsub.f32 %v1318, %v1562
      %v1739 = vsub.f32 %v1319, %v1564
      %v1740 = vsub.f32 %v1320, %v1566
      %v1741 = vsub.f32 %v1321, %v1568
      %v1742 = vsub.f32 %v1322, %v1570
      %v1743 = vsub.f32 %v1323, %v1572
      %v1744 = vsub.f32 %v1324, %v1574
      %v1745 = vsub.f32 %v1325, %v1576
      %v1746 = vsub.f32 %v1326, %v1578
      %v1747 = vsub.f32 %v1327, %v1580
      %v1748 = vsub.f32 %v1328, %v1582
      %v1749 = vsub.f32 %v1329, %v1584
      %v1750 = vsub.f32 %v1330, %v1586
      %v1751 = vsub.f32 %v1331, %v1588
      %v1752 = vsub.f32 %v1332, %v1590
      %v1753 = vsub.f32 %v1333, %v1592
      %v1754 = vsub.f32 %v1334, %v1594
      %v1755 = vsub.f32 %v1335, %v1596
      %v1756 = vsub.f32 %v1336, %v1598
      %v1757 = vsub.f32 %v1337, %v1600
      %v1758 = vsub.f32 %v1338, %v1602
      %v1759 = vsub.f32 %v1339, %v1604
      %v1760 = vsub.f32 %v1340, %v1606
      %v1761 = vsub.f32 %v1341, %v1608
      %v1762 = vsub.f32 %v1342, %v1610
      %v1763 = vsub.f32 %v1343, %v1612
      %v1764 = vsub.f32 %v1344, %v1614
      %v1765 = vsub.f32 %v1345, %v1616
      %v1766 = vsub.f32 %v1346, %v1618
      %v1767 = vsub.f32 %v1347, %v1620
      %v1768 = vsub.f32 %v1348, %v1622
      %v1769 = vsub.f32 %v1349, %v1624
      %v1770 = vsub.f32 %v1350, %v1626
      %v1771 = vsub.f32 %v1351, %v1628
      %v1772 = vsub.f32 %v1352, %v1630
      %v1773 = vsub.f32 %v1353, %v1632
      %v1774 = vsub.f32 %v1354, %v1634
      %v1775 = vsub.f32 %v1355, %v1636
      %v1776 = vsub.f32 %v1356, %v1638
      %v1777 = vsub.f32 %v1357, %v1640
      %v1778 = vsub.f32 %v1358, %v1642
      %v1779 = vsub.f32 %v1359, %v1644
      %v1780 = vsub.f32 %v1360, %v1646
      %v1781 = vsub.f32 %v1361, %v1648
      %v1782 = vsub.f32 %v1362, %v1650
      %v1783 = vsub.f32 %v1363, %v1652
      %v1784 = vsub.f32 %v1364, %v1654
      %v1785 = vsub.f32 %v1365, %v1656
      %v1786 = vsub.f32 %v1366, %v1658
      %v1787 = vsub.f32 %v1367, %v1660
      %v1788 = vsub.f32 %v1368, %v1662
      %v1789 = vsub.f32 %v1369, %v1664
      %v1790 = vsub.f32 %v1370, %v1666
      %v1791 = vsub.f32 %v1371, %v1668
      %v1792 = vsub.f32 %v1372, %v1670
      %v1793 = vsub.f32 %v1373, %v1672
      %v1794 = vsub.f32 %v1374, %v1674
      %1796 = vset.pattern.permute.xlu0 0
      %1797 = vperm.xlu0 %1796, %v1375
      %v1798 = vpop.permute.xlu0 %1797
      %1801 = vset.pattern.permute.xlu0 0
      %1802 = vperm.xlu0 %1801, %v1376
      %v1803 = vpop.permute.xlu0 %1802
      %1806 = vset.pattern.permute.xlu0 0
      %1807 = vperm.xlu0 %1806, %v1377
      %v1808 = vpop.permute.xlu0 %1807
      %1811 = vset.pattern.permute.xlu0 0
      %1812 = vperm.xlu0 %1811, %v1378
      %v1813 = vpop.permute.xlu0 %1812
      %1816 = vset.pattern.permute.xlu0 0
      %1817 = vperm.xlu0 %1816, %v1379
      %v1818 = vpop.permute.xlu0 %1817
      %1821 = vset.pattern.permute.xlu0 0
      %1822 = vperm.xlu0 %1821, %v1380
      %v1823 = vpop.permute.xlu0 %1822
      %1826 = vset.pattern.permute.xlu0 0
      %1827 = vperm.xlu0 %1826, %v1381
      %v1828 = vpop.permute.xlu0 %1827
      %1831 = vset.pattern.permute.xlu0 0
      %1832 = vperm.xlu0 %1831, %v1382
      %v1833 = vpop.permute.xlu0 %1832
      %1836 = vset.pattern.permute.xlu0 0
      %1837 = vperm.xlu0 %1836, %v1383
      %v1838 = vpop.permute.xlu0 %1837
      %1841 = vset.pattern.permute.xlu0 0
      %1842 = vperm.xlu0 %1841, %v1384
      %v1843 = vpop.permute.xlu0 %1842
      %1846 = vset.pattern.permute.xlu0 0
      %1847 = vperm.xlu0 %1846, %v1385
      %v1848 = vpop.permute.xlu0 %1847
      %1851 = vset.pattern.permute.xlu0 0
      %1852 = vperm.xlu0 %1851, %v1386
      %v1853 = vpop.permute.xlu0 %1852
      %1856 = vset.pattern.permute.xlu0 0
      %1857 = vperm.xlu0 %1856, %v1387
      %v1858 = vpop.permute.xlu0 %1857
      %1861 = vset.pattern.permute.xlu0 0
      %1862 = vperm.xlu0 %1861, %v1388
      %v1863 = vpop.permute.xlu0 %1862
      %1866 = vset.pattern.permute.xlu0 0
      %1867 = vperm.xlu0 %1866, %v1389
      %v1868 = vpop.permute.xlu0 %1867
      %1871 = vset.pattern.permute.xlu0 0
      %1872 = vperm.xlu0 %1871, %v1390
      %v1873 = vpop.permute.xlu0 %1872
      %1876 = vset.pattern.permute.xlu0 0
      %1877 = vperm.xlu0 %1876, %v1391
      %v1878 = vpop.permute.xlu0 %1877
      %1881 = vset.pattern.permute.xlu0 0
      %1882 = vperm.xlu0 %1881, %v1392
      %v1883 = vpop.permute.xlu0 %1882
      %1886 = vset.pattern.permute.xlu0 0
      %1887 = vperm.xlu0 %1886, %v1393
      %v1888 = vpop.permute.xlu0 %1887
      %1891 = vset.pattern.permute.xlu0 0
      %1892 = vperm.xlu0 %1891, %v1394
      %v1893 = vpop.permute.xlu0 %1892
      %1896 = vset.pattern.permute.xlu0 0
      %1897 = vperm.xlu0 %1896, %v1395
      %v1898 = vpop.permute.xlu0 %1897
      %1901 = vset.pattern.permute.xlu0 0
      %1902 = vperm.xlu0 %1901, %v1396
      %v1903 = vpop.permute.xlu0 %1902
      %1906 = vset.pattern.permute.xlu0 0
      %1907 = vperm.xlu0 %1906, %v1397
      %v1908 = vpop.permute.xlu0 %1907
      %1911 = vset.pattern.permute.xlu0 0
      %1912 = vperm.xlu0 %1911, %v1398
      %v1913 = vpop.permute.xlu0 %1912
      %1916 = vset.pattern.permute.xlu0 0
      %1917 = vperm.xlu0 %1916, %v1399
      %v1918 = vpop.permute.xlu0 %1917
      %1921 = vset.pattern.permute.xlu0 0
      %1922 = vperm.xlu0 %1921, %v1400
      %v1923 = vpop.permute.xlu0 %1922
      %1926 = vset.pattern.permute.xlu0 0
      %1927 = vperm.xlu0 %1926, %v1401
      %v1928 = vpop.permute.xlu0 %1927
      %1931 = vset.pattern.permute.xlu0 0
      %1932 = vperm.xlu0 %1931, %v1402
      %v1933 = vpop.permute.xlu0 %1932
      %1936 = vset.pattern.permute.xlu0 0
      %1937 = vperm.xlu0 %1936, %v1403
      %v1938 = vpop.permute.xlu0 %1937
      %1941 = vset.pattern.permute.xlu0 0
      %1942 = vperm.xlu0 %1941, %v1404
      %v1943 = vpop.permute.xlu0 %1942
      %1946 = vset.pattern.permute.xlu0 0
      %1947 = vperm.xlu0 %1946, %v1405
      %v1948 = vpop.permute.xlu0 %1947
      %1951 = vset.pattern.permute.xlu0 0
      %1952 = vperm.xlu0 %1951, %v1406
      %v1953 = vpop.permute.xlu0 %1952
      %1956 = vset.pattern.permute.xlu0 0
      %1957 = vperm.xlu0 %1956, %v1407
      %v1958 = vpop.permute.xlu0 %1957
      %1961 = vset.pattern.permute.xlu0 0
      %1962 = vperm.xlu0 %1961, %v1408
      %v1963 = vpop.permute.xlu0 %1962
      %1966 = vset.pattern.permute.xlu0 0
      %1967 = vperm.xlu0 %1966, %v1409
      %v1968 = vpop.permute.xlu0 %1967
      %1971 = vset.pattern.permute.xlu0 0
      %1972 = vperm.xlu0 %1971, %v1410
      %v1973 = vpop.permute.xlu0 %1972
      %1976 = vset.pattern.permute.xlu0 0
      %1977 = vperm.xlu0 %1976, %v1411
      %v1978 = vpop.permute.xlu0 %1977
      %1981 = vset.pattern.permute.xlu0 0
      %1982 = vperm.xlu0 %1981, %v1412
      %v1983 = vpop.permute.xlu0 %1982
      %1986 = vset.pattern.permute.xlu0 0
      %1987 = vperm.xlu0 %1986, %v1413
      %v1988 = vpop.permute.xlu0 %1987
      %1991 = vset.pattern.permute.xlu0 0
      %1992 = vperm.xlu0 %1991, %v1414
      %v1993 = vpop.permute.xlu0 %1992
      %1996 = vset.pattern.permute.xlu0 0
      %1997 = vperm.xlu0 %1996, %v1415
      %v1998 = vpop.permute.xlu0 %1997
      %2001 = vset.pattern.permute.xlu0 0
      %2002 = vperm.xlu0 %2001, %v1416
      %v2003 = vpop.permute.xlu0 %2002
      %2006 = vset.pattern.permute.xlu0 0
      %2007 = vperm.xlu0 %2006, %v1417
      %v2008 = vpop.permute.xlu0 %2007
      %2011 = vset.pattern.permute.xlu0 0
      %2012 = vperm.xlu0 %2011, %v1418
      %v2013 = vpop.permute.xlu0 %2012
      %2016 = vset.pattern.permute.xlu0 0
      %2017 = vperm.xlu0 %2016, %v1419
      %v2018 = vpop.permute.xlu0 %2017
      %2021 = vset.pattern.permute.xlu0 0
      %2022 = vperm.xlu0 %2021, %v1420
      %v2023 = vpop.permute.xlu0 %2022
      %2026 = vset.pattern.permute.xlu0 0
      %2027 = vperm.xlu0 %2026, %v1421
      %v2028 = vpop.permute.xlu0 %2027
      %2031 = vset.pattern.permute.xlu0 0
      %2032 = vperm.xlu0 %2031, %v1422
      %v2033 = vpop.permute.xlu0 %2032
      %2036 = vset.pattern.permute.xlu0 0
      %2037 = vperm.xlu0 %2036, %v1423
      %v2038 = vpop.permute.xlu0 %2037
      %2041 = vset.pattern.permute.xlu0 0
      %2042 = vperm.xlu0 %2041, %v1424
      %v2043 = vpop.permute.xlu0 %2042
      %2046 = vset.pattern.permute.xlu0 0
      %2047 = vperm.xlu0 %2046, %v1425
      %v2048 = vpop.permute.xlu0 %2047
      %2051 = vset.pattern.permute.xlu0 0
      %2052 = vperm.xlu0 %2051, %v1426
      %v2053 = vpop.permute.xlu0 %2052
      %2056 = vset.pattern.permute.xlu0 0
      %2057 = vperm.xlu0 %2056, %v1427
      %v2058 = vpop.permute.xlu0 %2057
      %2061 = vset.pattern.permute.xlu0 0
      %2062 = vperm.xlu0 %2061, %v1428
      %v2063 = vpop.permute.xlu0 %2062
      %2066 = vset.pattern.permute.xlu0 0
      %2067 = vperm.xlu0 %2066, %v1429
      %v2068 = vpop.permute.xlu0 %2067
      %2071 = vset.pattern.permute.xlu0 0
      %2072 = vperm.xlu0 %2071, %v1430
      %v2073 = vpop.permute.xlu0 %2072
      %2076 = vset.pattern.permute.xlu0 0
      %2077 = vperm.xlu0 %2076, %v1431
      %v2078 = vpop.permute.xlu0 %2077
      %2081 = vset.pattern.permute.xlu0 0
      %2082 = vperm.xlu0 %2081, %v1432
      %v2083 = vpop.permute.xlu0 %2082
      %2086 = vset.pattern.permute.xlu0 0
      %2087 = vperm.xlu0 %2086, %v1433
      %v2088 = vpop.permute.xlu0 %2087
      %2091 = vset.pattern.permute.xlu0 0
      %2092 = vperm.xlu0 %2091, %v1434
      %v2093 = vpop.permute.xlu0 %2092
      %v2095 = vmul.f32 %v174, %v1798
      %v2096 = vmul.f32 %v175, %v1798
      %v2097 = vmul.f32 %v176, %v1803
      %v2098 = vmul.f32 %v177, %v1803
      %v2099 = vmul.f32 %v178, %v1808
      %v2100 = vmul.f32 %v179, %v1808
      %v2101 = vmul.f32 %v180, %v1813
      %v2102 = vmul.f32 %v181, %v1813
      %v2103 = vmul.f32 %v182, %v1818
      %v2104 = vmul.f32 %v183, %v1818
      %v2105 = vmul.f32 %v184, %v1823
      %v2106 = vmul.f32 %v185, %v1823
      %v2107 = vmul.f32 %v186, %v1828
      %v2108 = vmul.f32 %v187, %v1828
      %v2109 = vmul.f32 %v188, %v1833
      %v2110 = vmul.f32 %v189, %v1833
      %v2111 = vmul.f32 %v190, %v1838
      %v2112 = vmul.f32 %v191, %v1838
      %v2113 = vmul.f32 %v192, %v1843
      %v2114 = vmul.f32 %v193, %v1843
      %v2115 = vmul.f32 %v194, %v1848
      %v2116 = vmul.f32 %v195, %v1848
      %v2117 = vmul.f32 %v196, %v1853
      %v2118 = vmul.f32 %v197, %v1853
      %v2119 = vmul.f32 %v198, %v1858
      %v2120 = vmul.f32 %v199, %v1858
      %v2121 = vmul.f32 %v200, %v1863
      %v2122 = vmul.f32 %v201, %v1863
      %v2123 = vmul.f32 %v202, %v1868
      %v2124 = vmul.f32 %v203, %v1868
      %v2125 = vmul.f32 %v204, %v1873
      %v2126 = vmul.f32 %v205, %v1873
      %v2127 = vmul.f32 %v206, %v1878
      %v2128 = vmul.f32 %v207, %v1878
      %v2129 = vmul.f32 %v208, %v1883
      %v2130 = vmul.f32 %v209, %v1883
      %v2131 = vmul.f32 %v210, %v1888
      %v2132 = vmul.f32 %v211, %v1888
      %v2133 = vmul.f32 %v212, %v1893
      %v2134 = vmul.f32 %v213, %v1893
      %v2135 = vmul.f32 %v214, %v1898
      %v2136 = vmul.f32 %v215, %v1898
      %v2137 = vmul.f32 %v216, %v1903
      %v2138 = vmul.f32 %v217, %v1903
      %v2139 = vmul.f32 %v218, %v1908
      %v2140 = vmul.f32 %v219, %v1908
      %v2141 = vmul.f32 %v220, %v1913
      %v2142 = vmul.f32 %v221, %v1913
      %v2143 = vmul.f32 %v222, %v1918
      %v2144 = vmul.f32 %v223, %v1918
      %v2145 = vmul.f32 %v224, %v1923
      %v2146 = vmul.f32 %v225, %v1923
      %v2147 = vmul.f32 %v226, %v1928
      %v2148 = vmul.f32 %v227, %v1928
      %v2149 = vmul.f32 %v228, %v1933
      %v2150 = vmul.f32 %v229, %v1933
      %v2151 = vmul.f32 %v230, %v1938
      %v2152 = vmul.f32 %v231, %v1938
      %v2153 = vmul.f32 %v232, %v1943
      %v2154 = vmul.f32 %v233, %v1943
      %v2155 = vmul.f32 %v234, %v1948
      %v2156 = vmul.f32 %v235, %v1948
      %v2157 = vmul.f32 %v236, %v1953
      %v2158 = vmul.f32 %v237, %v1953
      %v2159 = vmul.f32 %v238, %v1958
      %v2160 = vmul.f32 %v239, %v1958
      %v2161 = vmul.f32 %v240, %v1963
      %v2162 = vmul.f32 %v241, %v1963
      %v2163 = vmul.f32 %v242, %v1968
      %v2164 = vmul.f32 %v243, %v1968
      %v2165 = vmul.f32 %v244, %v1973
      %v2166 = vmul.f32 %v245, %v1973
      %v2167 = vmul.f32 %v246, %v1978
      %v2168 = vmul.f32 %v247, %v1978
      %v2169 = vmul.f32 %v248, %v1983
      %v2170 = vmul.f32 %v249, %v1983
      %v2171 = vmul.f32 %v250, %v1988
      %v2172 = vmul.f32 %v251, %v1988
      %v2173 = vmul.f32 %v252, %v1993
      %v2174 = vmul.f32 %v253, %v1993
      %v2175 = vmul.f32 %v254, %v1998
      %v2176 = vmul.f32 %v255, %v1998
      %v2177 = vmul.f32 %v256, %v2003
      %v2178 = vmul.f32 %v257, %v2003
      %v2179 = vmul.f32 %v258, %v2008
      %v2180 = vmul.f32 %v259, %v2008
      %v2181 = vmul.f32 %v260, %v2013
      %v2182 = vmul.f32 %v261, %v2013
      %v2183 = vmul.f32 %v262, %v2018
      %v2184 = vmul.f32 %v263, %v2018
      %v2185 = vmul.f32 %v264, %v2023
      %v2186 = vmul.f32 %v265, %v2023
      %v2187 = vmul.f32 %v266, %v2028
      %v2188 = vmul.f32 %v267, %v2028
      %v2189 = vmul.f32 %v268, %v2033
      %v2190 = vmul.f32 %v269, %v2033
      %v2191 = vmul.f32 %v270, %v2038
      %v2192 = vmul.f32 %v271, %v2038
      %v2193 = vmul.f32 %v272, %v2043
      %v2194 = vmul.f32 %v273, %v2043
      %v2195 = vmul.f32 %v274, %v2048
      %v2196 = vmul.f32 %v275, %v2048
      %v2197 = vmul.f32 %v276, %v2053
      %v2198 = vmul.f32 %v277, %v2053
      %v2199 = vmul.f32 %v278, %v2058
      %v2200 = vmul.f32 %v279, %v2058
      %v2201 = vmul.f32 %v280, %v2063
      %v2202 = vmul.f32 %v281, %v2063
      %v2203 = vmul.f32 %v282, %v2068
      %v2204 = vmul.f32 %v283, %v2068
      %v2205 = vmul.f32 %v284, %v2073
      %v2206 = vmul.f32 %v285, %v2073
      %v2207 = vmul.f32 %v286, %v2078
      %v2208 = vmul.f32 %v287, %v2078
      %v2209 = vmul.f32 %v288, %v2083
      %v2210 = vmul.f32 %v289, %v2083
      %v2211 = vmul.f32 %v290, %v2088
      %v2212 = vmul.f32 %v291, %v2088
      %v2213 = vmul.f32 %v292, %v2093
      %v2214 = vmul.f32 %v293, %v2093
      %2216 = vset.pattern.permute.xlu0 1
      %2217 = vperm.xlu0 %2216, %v1735
      %v2218 = vpop.permute.xlu0 %2217
      %2221 = vset.pattern.permute.xlu0 1
      %2222 = vperm.xlu0 %2221, %v1736
      %v2223 = vpop.permute.xlu0 %2222
      %2226 = vset.pattern.permute.xlu0 1
      %2227 = vperm.xlu0 %2226, %v1737
      %v2228 = vpop.permute.xlu0 %2227
      %2231 = vset.pattern.permute.xlu0 1
      %2232 = vperm.xlu0 %2231, %v1738
      %v2233 = vpop.permute.xlu0 %2232
      %2236 = vset.pattern.permute.xlu0 1
      %2237 = vperm.xlu0 %2236, %v1739
      %v2238 = vpop.permute.xlu0 %2237
      %2241 = vset.pattern.permute.xlu0 1
      %2242 = vperm.xlu0 %2241, %v1740
      %v2243 = vpop.permute.xlu0 %2242
      %2246 = vset.pattern.permute.xlu0 1
      %2247 = vperm.xlu0 %2246, %v1741
      %v2248 = vpop.permute.xlu0 %2247
      %2251 = vset.pattern.permute.xlu0 1
      %2252 = vperm.xlu0 %2251, %v1742
      %v2253 = vpop.permute.xlu0 %2252
      %2256 = vset.pattern.permute.xlu0 1
      %2257 = vperm.xlu0 %2256, %v1743
      %v2258 = vpop.permute.xlu0 %2257
      %2261 = vset.pattern.permute.xlu0 1
      %2262 = vperm.xlu0 %2261, %v1744
      %v2263 = vpop.permute.xlu0 %2262
      %2266 = vset.pattern.permute.xlu0 1
      %2267 = vperm.xlu0 %2266, %v1745
      %v2268 = vpop.permute.xlu0 %2267
      %2271 = vset.pattern.permute.xlu0 1
      %2272 = vperm.xlu0 %2271, %v1746
      %v2273 = vpop.permute.xlu0 %2272
      %2276 = vset.pattern.permute.xlu0 1
      %2277 = vperm.xlu0 %2276, %v1747
      %v2278 = vpop.permute.xlu0 %2277
      %2281 = vset.pattern.permute.xlu0 1
      %2282 = vperm.xlu0 %2281, %v1748
      %v2283 = vpop.permute.xlu0 %2282
      %2286 = vset.pattern.permute.xlu0 1
      %2287 = vperm.xlu0 %2286, %v1749
      %v2288 = vpop.permute.xlu0 %2287
      %2291 = vset.pattern.permute.xlu0 1
      %2292 = vperm.xlu0 %2291, %v1750
      %v2293 = vpop.permute.xlu0 %2292
      %2296 = vset.pattern.permute.xlu0 1
      %2297 = vperm.xlu0 %2296, %v1751
      %v2298 = vpop.permute.xlu0 %2297
      %2301 = vset.pattern.permute.xlu0 1
      %2302 = vperm.xlu0 %2301, %v1752
      %v2303 = vpop.permute.xlu0 %2302
      %2306 = vset.pattern.permute.xlu0 1
      %2307 = vperm.xlu0 %2306, %v1753
      %v2308 = vpop.permute.xlu0 %2307
      %2311 = vset.pattern.permute.xlu0 1
      %2312 = vperm.xlu0 %2311, %v1754
      %v2313 = vpop.permute.xlu0 %2312
      %2316 = vset.pattern.permute.xlu0 1
      %2317 = vperm.xlu0 %2316, %v1755
      %v2318 = vpop.permute.xlu0 %2317
      %2321 = vset.pattern.permute.xlu0 1
      %2322 = vperm.xlu0 %2321, %v1756
      %v2323 = vpop.permute.xlu0 %2322
      %2326 = vset.pattern.permute.xlu0 1
      %2327 = vperm.xlu0 %2326, %v1757
      %v2328 = vpop.permute.xlu0 %2327
      %2331 = vset.pattern.permute.xlu0 1
      %2332 = vperm.xlu0 %2331, %v1758
      %v2333 = vpop.permute.xlu0 %2332
      %2336 = vset.pattern.permute.xlu0 1
      %2337 = vperm.xlu0 %2336, %v1759
      %v2338 = vpop.permute.xlu0 %2337
      %2341 = vset.pattern.permute.xlu0 1
      %2342 = vperm.xlu0 %2341, %v1760
      %v2343 = vpop.permute.xlu0 %2342
      %2346 = vset.pattern.permute.xlu0 1
      %2347 = vperm.xlu0 %2346, %v1761
      %v2348 = vpop.permute.xlu0 %2347
      %2351 = vset.pattern.permute.xlu0 1
      %2352 = vperm.xlu0 %2351, %v1762
      %v2353 = vpop.permute.xlu0 %2352
      %2356 = vset.pattern.permute.xlu0 1
      %2357 = vperm.xlu0 %2356, %v1763
      %v2358 = vpop.permute.xlu0 %2357
      %2361 = vset.pattern.permute.xlu0 1
      %2362 = vperm.xlu0 %2361, %v1764
      %v2363 = vpop.permute.xlu0 %2362
      %2366 = vset.pattern.permute.xlu0 1
      %2367 = vperm.xlu0 %2366, %v1765
      %v2368 = vpop.permute.xlu0 %2367
      %2371 = vset.pattern.permute.xlu0 1
      %2372 = vperm.xlu0 %2371, %v1766
      %v2373 = vpop.permute.xlu0 %2372
      %2376 = vset.pattern.permute.xlu0 1
      %2377 = vperm.xlu0 %2376, %v1767
      %v2378 = vpop.permute.xlu0 %2377
      %2381 = vset.pattern.permute.xlu0 1
      %2382 = vperm.xlu0 %2381, %v1768
      %v2383 = vpop.permute.xlu0 %2382
      %2386 = vset.pattern.permute.xlu0 1
      %2387 = vperm.xlu0 %2386, %v1769
      %v2388 = vpop.permute.xlu0 %2387
      %2391 = vset.pattern.permute.xlu0 1
      %2392 = vperm.xlu0 %2391, %v1770
      %v2393 = vpop.permute.xlu0 %2392
      %2396 = vset.pattern.permute.xlu0 1
      %2397 = vperm.xlu0 %2396, %v1771
      %v2398 = vpop.permute.xlu0 %2397
      %2401 = vset.pattern.permute.xlu0 1
      %2402 = vperm.xlu0 %2401, %v1772
      %v2403 = vpop.permute.xlu0 %2402
      %2406 = vset.pattern.permute.xlu0 1
      %2407 = vperm.xlu0 %2406, %v1773
      %v2408 = vpop.permute.xlu0 %2407
      %2411 = vset.pattern.permute.xlu0 1
      %2412 = vperm.xlu0 %2411, %v1774
      %v2413 = vpop.permute.xlu0 %2412
      %2416 = vset.pattern.permute.xlu0 1
      %2417 = vperm.xlu0 %2416, %v1775
      %v2418 = vpop.permute.xlu0 %2417
      %2421 = vset.pattern.permute.xlu0 1
      %2422 = vperm.xlu0 %2421, %v1776
      %v2423 = vpop.permute.xlu0 %2422
      %2426 = vset.pattern.permute.xlu0 1
      %2427 = vperm.xlu0 %2426, %v1777
      %v2428 = vpop.permute.xlu0 %2427
      %2431 = vset.pattern.permute.xlu0 1
      %2432 = vperm.xlu0 %2431, %v1778
      %v2433 = vpop.permute.xlu0 %2432
      %2436 = vset.pattern.permute.xlu0 1
      %2437 = vperm.xlu0 %2436, %v1779
      %v2438 = vpop.permute.xlu0 %2437
      %2441 = vset.pattern.permute.xlu0 1
      %2442 = vperm.xlu0 %2441, %v1780
      %v2443 = vpop.permute.xlu0 %2442
      %2446 = vset.pattern.permute.xlu0 1
      %2447 = vperm.xlu0 %2446, %v1781
      %v2448 = vpop.permute.xlu0 %2447
      %2451 = vset.pattern.permute.xlu0 1
      %2452 = vperm.xlu0 %2451, %v1782
      %v2453 = vpop.permute.xlu0 %2452
      %2456 = vset.pattern.permute.xlu0 1
      %2457 = vperm.xlu0 %2456, %v1783
      %v2458 = vpop.permute.xlu0 %2457
      %2461 = vset.pattern.permute.xlu0 1
      %2462 = vperm.xlu0 %2461, %v1784
      %v2463 = vpop.permute.xlu0 %2462
      %2466 = vset.pattern.permute.xlu0 1
      %2467 = vperm.xlu0 %2466, %v1785
      %v2468 = vpop.permute.xlu0 %2467
      %2471 = vset.pattern.permute.xlu0 1
      %2472 = vperm.xlu0 %2471, %v1786
      %v2473 = vpop.permute.xlu0 %2472
      %2476 = vset.pattern.permute.xlu0 1
      %2477 = vperm.xlu0 %2476, %v1787
      %v2478 = vpop.permute.xlu0 %2477
      %2481 = vset.pattern.permute.xlu0 1
      %2482 = vperm.xlu0 %2481, %v1788
      %v2483 = vpop.permute.xlu0 %2482
      %2486 = vset.pattern.permute.xlu0 1
      %2487 = vperm.xlu0 %2486, %v1789
      %v2488 = vpop.permute.xlu0 %2487
      %2491 = vset.pattern.permute.xlu0 1
      %2492 = vperm.xlu0 %2491, %v1790
      %v2493 = vpop.permute.xlu0 %2492
      %2496 = vset.pattern.permute.xlu0 1
      %2497 = vperm.xlu0 %2496, %v1791
      %v2498 = vpop.permute.xlu0 %2497
      %2501 = vset.pattern.permute.xlu0 1
      %2502 = vperm.xlu0 %2501, %v1792
      %v2503 = vpop.permute.xlu0 %2502
      %2506 = vset.pattern.permute.xlu0 1
      %2507 = vperm.xlu0 %2506, %v1793
      %v2508 = vpop.permute.xlu0 %2507
      %2511 = vset.pattern.permute.xlu0 1
      %2512 = vperm.xlu0 %2511, %v1794
      %v2513 = vpop.permute.xlu0 %2512
      %v2515 = vadd.f32 %v2095, %v2218
      %v2516 = vadd.f32 %v2096, %v2218
      %v2517 = vadd.f32 %v2097, %v2223
      %v2518 = vadd.f32 %v2098, %v2223
      %v2519 = vadd.f32 %v2099, %v2228
      %v2520 = vadd.f32 %v2100, %v2228
      %v2521 = vadd.f32 %v2101, %v2233
      %v2522 = vadd.f32 %v2102, %v2233
      %v2523 = vadd.f32 %v2103, %v2238
      %v2524 = vadd.f32 %v2104, %v2238
      %v2525 = vadd.f32 %v2105, %v2243
      %v2526 = vadd.f32 %v2106, %v2243
      %v2527 = vadd.f32 %v2107, %v2248
      %v2528 = vadd.f32 %v2108, %v2248
      %v2529 = vadd.f32 %v2109, %v2253
      %v2530 = vadd.f32 %v2110, %v2253
      %v2531 = vadd.f32 %v2111, %v2258
      %v2532 = vadd.f32 %v2112, %v2258
      %v2533 = vadd.f32 %v2113, %v2263
      %v2534 = vadd.f32 %v2114, %v2263
      %v2535 = vadd.f32 %v2115, %v2268
      %v2536 = vadd.f32 %v2116, %v2268
      %v2537 = vadd.f32 %v2117, %v2273
      %v2538 = vadd.f32 %v2118, %v2273
      %v2539 = vadd.f32 %v2119, %v2278
      %v2540 = vadd.f32 %v2120, %v2278
      %v2541 = vadd.f32 %v2121, %v2283
      %v2542 = vadd.f32 %v2122, %v2283
      %v2543 = vadd.f32 %v2123, %v2288
      %v2544 = vadd.f32 %v2124, %v2288
      %v2545 = vadd.f32 %v2125, %v2293
      %v2546 = vadd.f32 %v2126, %v2293
      %v2547 = vadd.f32 %v2127, %v2298
      %v2548 = vadd.f32 %v2128, %v2298
      %v2549 = vadd.f32 %v2129, %v2303
      %v2550 = vadd.f32 %v2130, %v2303
      %v2551 = vadd.f32 %v2131, %v2308
      %v2552 = vadd.f32 %v2132, %v2308
      %v2553 = vadd.f32 %v2133, %v2313
      %v2554 = vadd.f32 %v2134, %v2313
      %v2555 = vadd.f32 %v2135, %v2318
      %v2556 = vadd.f32 %v2136, %v2318
      %v2557 = vadd.f32 %v2137, %v2323
      %v2558 = vadd.f32 %v2138, %v2323
      %v2559 = vadd.f32 %v2139, %v2328
      %v2560 = vadd.f32 %v2140, %v2328
      %v2561 = vadd.f32 %v2141, %v2333
      %v2562 = vadd.f32 %v2142, %v2333
      %v2563 = vadd.f32 %v2143, %v2338
      %v2564 = vadd.f32 %v2144, %v2338
      %v2565 = vadd.f32 %v2145, %v2343
      %v2566 = vadd.f32 %v2146, %v2343
      %v2567 = vadd.f32 %v2147, %v2348
      %v2568 = vadd.f32 %v2148, %v2348
      %v2569 = vadd.f32 %v2149, %v2353
      %v2570 = vadd.f32 %v2150, %v2353
      %v2571 = vadd.f32 %v2151, %v2358
      %v2572 = vadd.f32 %v2152, %v2358
      %v2573 = vadd.f32 %v2153, %v2363
      %v2574 = vadd.f32 %v2154, %v2363
      %v2575 = vadd.f32 %v2155, %v2368
      %v2576 = vadd.f32 %v2156, %v2368
      %v2577 = vadd.f32 %v2157, %v2373
      %v2578 = vadd.f32 %v2158, %v2373
      %v2579 = vadd.f32 %v2159, %v2378
      %v2580 = vadd.f32 %v2160, %v2378
      %v2581 = vadd.f32 %v2161, %v2383
      %v2582 = vadd.f32 %v2162, %v2383
      %v2583 = vadd.f32 %v2163, %v2388
      %v2584 = vadd.f32 %v2164, %v2388
      %v2585 = vadd.f32 %v2165, %v2393
      %v2586 = vadd.f32 %v2166, %v2393
      %v2587 = vadd.f32 %v2167, %v2398
      %v2588 = vadd.f32 %v2168, %v2398
      %v2589 = vadd.f32 %v2169, %v2403
      %v2590 = vadd.f32 %v2170, %v2403
      %v2591 = vadd.f32 %v2171, %v2408
      %v2592 = vadd.f32 %v2172, %v2408
      %v2593 = vadd.f32 %v2173, %v2413
      %v2594 = vadd.f32 %v2174, %v2413
      %v2595 = vadd.f32 %v2175, %v2418
      %v2596 = vadd.f32 %v2176, %v2418
      %v2597 = vadd.f32 %v2177, %v2423
      %v2598 = vadd.f32 %v2178, %v2423
      %v2599 = vadd.f32 %v2179, %v2428
      %v2600 = vadd.f32 %v2180, %v2428
      %v2601 = vadd.f32 %v2181, %v2433
      %v2602 = vadd.f32 %v2182, %v2433
      %v2603 = vadd.f32 %v2183, %v2438
      %v2604 = vadd.f32 %v2184, %v2438
      %v2605 = vadd.f32 %v2185, %v2443
      %v2606 = vadd.f32 %v2186, %v2443
      %v2607 = vadd.f32 %v2187, %v2448
      %v2608 = vadd.f32 %v2188, %v2448
      %v2609 = vadd.f32 %v2189, %v2453
      %v2610 = vadd.f32 %v2190, %v2453
      %v2611 = vadd.f32 %v2191, %v2458
      %v2612 = vadd.f32 %v2192, %v2458
      %v2613 = vadd.f32 %v2193, %v2463
      %v2614 = vadd.f32 %v2194, %v2463
      %v2615 = vadd.f32 %v2195, %v2468
      %v2616 = vadd.f32 %v2196, %v2468
      %v2617 = vadd.f32 %v2197, %v2473
      %v2618 = vadd.f32 %v2198, %v2473
      %v2619 = vadd.f32 %v2199, %v2478
      %v2620 = vadd.f32 %v2200, %v2478
      %v2621 = vadd.f32 %v2201, %v2483
      %v2622 = vadd.f32 %v2202, %v2483
      %v2623 = vadd.f32 %v2203, %v2488
      %v2624 = vadd.f32 %v2204, %v2488
      %v2625 = vadd.f32 %v2205, %v2493
      %v2626 = vadd.f32 %v2206, %v2493
      %v2627 = vadd.f32 %v2207, %v2498
      %v2628 = vadd.f32 %v2208, %v2498
      %v2629 = vadd.f32 %v2209, %v2503
      %v2630 = vadd.f32 %v2210, %v2503
      %v2631 = vadd.f32 %v2211, %v2508
      %v2632 = vadd.f32 %v2212, %v2508
      %v2633 = vadd.f32 %v2213, %v2513
      %v2634 = vadd.f32 %v2214, %v2513
      %2635 = vst [vmem:[%s172] sm:$0xff] %v2515
      %2636 = vst.msk [vmem:[%s172 + $0x8] sm:$0xff] %vm294, %v2516
      %2637 = vst [vmem:[%s172 + $0x10] sm:$0xff] %v2517
      %2638 = vst.msk [vmem:[%s172 + $0x18] sm:$0xff] %vm294, %v2518
      %2639 = vst [vmem:[%s172 + $0x20] sm:$0xff] %v2519
      %2640 = vst.msk [vmem:[%s172 + $0x28] sm:$0xff] %vm294, %v2520
      %2641 = vst [vmem:[%s172 + $0x30] sm:$0xff] %v2521
      %2642 = vst.msk [vmem:[%s172 + $0x38] sm:$0xff] %vm294, %v2522
      %2643 = vst [vmem:[%s172 + $0x40] sm:$0xff] %v2523
      %2644 = vst.msk [vmem:[%s172 + $0x48] sm:$0xff] %vm294, %v2524
      %2645 = vst [vmem:[%s172 + $0x50] sm:$0xff] %v2525
      %2646 = vst.msk [vmem:[%s172 + $0x58] sm:$0xff] %vm294, %v2526
      %2647 = vst [vmem:[%s172 + $0x60] sm:$0xff] %v2527
      %2648 = vst.msk [vmem:[%s172 + $0x68] sm:$0xff] %vm294, %v2528
      %2649 = vst [vmem:[%s172 + $0x70] sm:$0xff] %v2529
      %2650 = vst.msk [vmem:[%s172 + $0x78] sm:$0xff] %vm294, %v2530
      %2651 = vst [vmem:[%s172 + $0x80] sm:$0xff] %v2531
      %2652 = vst.msk [vmem:[%s172 + $0x88] sm:$0xff] %vm294, %v2532
      %2653 = vst [vmem:[%s172 + $0x90] sm:$0xff] %v2533
      %2654 = vst.msk [vmem:[%s172 + $0x98] sm:$0xff] %vm294, %v2534
      %2655 = vst [vmem:[%s172 + $0xa0] sm:$0xff] %v2535
      %2656 = vst.msk [vmem:[%s172 + $0xa8] sm:$0xff] %vm294, %v2536
      %2657 = vst [vmem:[%s172 + $0xb0] sm:$0xff] %v2537
      %2658 = vst.msk [vmem:[%s172 + $0xb8] sm:$0xff] %vm294, %v2538
      %2659 = vst [vmem:[%s172 + $0xc0] sm:$0xff] %v2539
      %2660 = vst.msk [vmem:[%s172 + $0xc8] sm:$0xff] %vm294, %v2540
      %2661 = vst [vmem:[%s172 + $0xd0] sm:$0xff] %v2541
      %2662 = vst.msk [vmem:[%s172 + $0xd8] sm:$0xff] %vm294, %v2542
      %2663 = vst [vmem:[%s172 + $0xe0] sm:$0xff] %v2543
      %2664 = vst.msk [vmem:[%s172 + $0xe8] sm:$0xff] %vm294, %v2544
      %2665 = vst [vmem:[%s172 + $0xf0] sm:$0xff] %v2545
      %2666 = vst.msk [vmem:[%s172 + $0xf8] sm:$0xff] %vm294, %v2546
      %2667 = vst [vmem:[%s172 + $0x100] sm:$0xff] %v2547
      %2668 = vst.msk [vmem:[%s172 + $0x108] sm:$0xff] %vm294, %v2548
      %2669 = vst [vmem:[%s172 + $0x110] sm:$0xff] %v2549
      %2670 = vst.msk [vmem:[%s172 + $0x118] sm:$0xff] %vm294, %v2550
      %2671 = vst [vmem:[%s172 + $0x120] sm:$0xff] %v2551
      %2672 = vst.msk [vmem:[%s172 + $0x128] sm:$0xff] %vm294, %v2552
      %2673 = vst [vmem:[%s172 + $0x130] sm:$0xff] %v2553
      %2674 = vst.msk [vmem:[%s172 + $0x138] sm:$0xff] %vm294, %v2554
      %2675 = vst [vmem:[%s172 + $0x140] sm:$0xff] %v2555
      %2676 = vst.msk [vmem:[%s172 + $0x148] sm:$0xff] %vm294, %v2556
      %2677 = vst [vmem:[%s172 + $0x150] sm:$0xff] %v2557
      %2678 = vst.msk [vmem:[%s172 + $0x158] sm:$0xff] %vm294, %v2558
      %2679 = vst [vmem:[%s172 + $0x160] sm:$0xff] %v2559
      %2680 = vst.msk [vmem:[%s172 + $0x168] sm:$0xff] %vm294, %v2560
      %2681 = vst [vmem:[%s172 + $0x170] sm:$0xff] %v2561
      %2682 = vst.msk [vmem:[%s172 + $0x178] sm:$0xff] %vm294, %v2562
      %2683 = vst [vmem:[%s172 + $0x180] sm:$0xff] %v2563
      %2684 = vst.msk [vmem:[%s172 + $0x188] sm:$0xff] %vm294, %v2564
      %2685 = vst [vmem:[%s172 + $0x190] sm:$0xff] %v2565
      %2686 = vst.msk [vmem:[%s172 + $0x198] sm:$0xff] %vm294, %v2566
      %2687 = vst [vmem:[%s172 + $0x1a0] sm:$0xff] %v2567
      %2688 = vst.msk [vmem:[%s172 + $0x1a8] sm:$0xff] %vm294, %v2568
      %2689 = vst [vmem:[%s172 + $0x1b0] sm:$0xff] %v2569
      %2690 = vst.msk [vmem:[%s172 + $0x1b8] sm:$0xff] %vm294, %v2570
      %2691 = vst [vmem:[%s172 + $0x1c0] sm:$0xff] %v2571
      %2692 = vst.msk [vmem:[%s172 + $0x1c8] sm:$0xff] %vm294, %v2572
      %2693 = vst [vmem:[%s172 + $0x1d0] sm:$0xff] %v2573
      %2694 = vst.msk [vmem:[%s172 + $0x1d8] sm:$0xff] %vm294, %v2574
      %2695 = vst [vmem:[%s172 + $0x1e0] sm:$0xff] %v2575
      %2696 = vst.msk [vmem:[%s172 + $0x1e8] sm:$0xff] %vm294, %v2576
      %2697 = vst [vmem:[%s172 + $0x1f0] sm:$0xff] %v2577
      %2698 = vst.msk [vmem:[%s172 + $0x1f8] sm:$0xff] %vm294, %v2578
      %2699 = vst [vmem:[%s172 + $0x200] sm:$0xff] %v2579
      %2700 = vst.msk [vmem:[%s172 + $0x208] sm:$0xff] %vm294, %v2580
      %2701 = vst [vmem:[%s172 + $0x210] sm:$0xff] %v2581
      %2702 = vst.msk [vmem:[%s172 + $0x218] sm:$0xff] %vm294, %v2582
      %2703 = vst [vmem:[%s172 + $0x220] sm:$0xff] %v2583
      %2704 = vst.msk [vmem:[%s172 + $0x228] sm:$0xff] %vm294, %v2584
      %2705 = vst [vmem:[%s172 + $0x230] sm:$0xff] %v2585
      %2706 = vst.msk [vmem:[%s172 + $0x238] sm:$0xff] %vm294, %v2586
      %2707 = vst [vmem:[%s172 + $0x240] sm:$0xff] %v2587
      %2708 = vst.msk [vmem:[%s172 + $0x248] sm:$0xff] %vm294, %v2588
      %2709 = vst [vmem:[%s172 + $0x250] sm:$0xff] %v2589
      %2710 = vst.msk [vmem:[%s172 + $0x258] sm:$0xff] %vm294, %v2590
      %2711 = vst [vmem:[%s172 + $0x260] sm:$0xff] %v2591
      %2712 = vst.msk [vmem:[%s172 + $0x268] sm:$0xff] %vm294, %v2592
      %2713 = vst [vmem:[%s172 + $0x270] sm:$0xff] %v2593
      %2714 = vst.msk [vmem:[%s172 + $0x278] sm:$0xff] %vm294, %v2594
      %2715 = vst [vmem:[%s172 + $0x280] sm:$0xff] %v2595
      %2716 = vst.msk [vmem:[%s172 + $0x288] sm:$0xff] %vm294, %v2596
      %2717 = vst [vmem:[%s172 + $0x290] sm:$0xff] %v2597
      %2718 = vst.msk [vmem:[%s172 + $0x298] sm:$0xff] %vm294, %v2598
      %2719 = vst [vmem:[%s172 + $0x2a0] sm:$0xff] %v2599
      %2720 = vst.msk [vmem:[%s172 + $0x2a8] sm:$0xff] %vm294, %v2600
      %2721 = vst [vmem:[%s172 + $0x2b0] sm:$0xff] %v2601
      %2722 = vst.msk [vmem:[%s172 + $0x2b8] sm:$0xff] %vm294, %v2602
      %2723 = vst [vmem:[%s172 + $0x2c0] sm:$0xff] %v2603
      %2724 = vst.msk [vmem:[%s172 + $0x2c8] sm:$0xff] %vm294, %v2604
      %2725 = vst [vmem:[%s172 + $0x2d0] sm:$0xff] %v2605
      %2726 = vst.msk [vmem:[%s172 + $0x2d8] sm:$0xff] %vm294, %v2606
      %2727 = vst [vmem:[%s172 + $0x2e0] sm:$0xff] %v2607
      %2728 = vst.msk [vmem:[%s172 + $0x2e8] sm:$0xff] %vm294, %v2608
      %2729 = vst [vmem:[%s172 + $0x2f0] sm:$0xff] %v2609
      %2730 = vst.msk [vmem:[%s172 + $0x2f8] sm:$0xff] %vm294, %v2610
      %2731 = vst [vmem:[%s172 + $0x300] sm:$0xff] %v2611
      %2732 = vst.msk [vmem:[%s172 + $0x308] sm:$0xff] %vm294, %v2612
      %2733 = vst [vmem:[%s172 + $0x310] sm:$0xff] %v2613
      %2734 = vst.msk [vmem:[%s172 + $0x318] sm:$0xff] %vm294, %v2614
      %2735 = vst [vmem:[%s172 + $0x320] sm:$0xff] %v2615
      %2736 = vst.msk [vmem:[%s172 + $0x328] sm:$0xff] %vm294, %v2616
      %2737 = vst [vmem:[%s172 + $0x330] sm:$0xff] %v2617
      %2738 = vst.msk [vmem:[%s172 + $0x338] sm:$0xff] %vm294, %v2618
      %2739 = vst [vmem:[%s172 + $0x340] sm:$0xff] %v2619
      %2740 = vst.msk [vmem:[%s172 + $0x348] sm:$0xff] %vm294, %v2620
      %2741 = vst [vmem:[%s172 + $0x350] sm:$0xff] %v2621
      %2742 = vst.msk [vmem:[%s172 + $0x358] sm:$0xff] %vm294, %v2622
      %2743 = vst [vmem:[%s172 + $0x360] sm:$0xff] %v2623
      %2744 = vst.msk [vmem:[%s172 + $0x368] sm:$0xff] %vm294, %v2624
      %2745 = vst [vmem:[%s172 + $0x370] sm:$0xff] %v2625
      %2746 = vst.msk [vmem:[%s172 + $0x378] sm:$0xff] %vm294, %v2626
      %2747 = vst [vmem:[%s172 + $0x380] sm:$0xff] %v2627
      %2748 = vst.msk [vmem:[%s172 + $0x388] sm:$0xff] %vm294, %v2628
      %2749 = vst [vmem:[%s172 + $0x390] sm:$0xff] %v2629
      %2750 = vst.msk [vmem:[%s172 + $0x398] sm:$0xff] %vm294, %v2630
      %2751 = vst [vmem:[%s172 + $0x3a0] sm:$0xff] %v2631
      %2752 = vst.msk [vmem:[%s172 + $0x3a8] sm:$0xff] %vm294, %v2632
      %2753 = vst [vmem:[%s172 + $0x3b0] sm:$0xff] %v2633
      %2754 = vst.msk [vmem:[%s172 + $0x3b8] sm:$0xff] %vm294, %v2634
      %s2755 = smul.u32 60, %s13
      %p2756 = scmp.lt.s32.totalorder %s2755, 119
      %s2757 = scalar_select %p2756, %s2755, 119
      %s2758 = smul.addr %s2757, 2
      %s2759 = smul.addr %s2758, 8
      %s2760 = scalar_lea.vmem %s2, %s2759
      // Predicated region
      $region29: #{tpu_custom_call.1} parent=27 // pred_check
        %p2761 = pneg %p83
      $region30: #{tpu_custom_call.1} parent=27 // pred_check_branch
        %2763 = sbr.rel (%p2761) target = $region32
      $region31: #{tpu_custom_call.1} parent=27 // pred_region
        %s2764 = smul.u32 60, %s13
      $region32: #{tpu_custom_call.1} parent=27 // pred_fallthru
        _
    $region28: #{tpu_custom_call.1} parent=5 // pred_fallthru
      _
    %p2765 = scmp.le.s32.totalorder 2, %s8
    // Predicated region
    $region33: #{tpu_custom_call.1} parent=5 // pred_check
      %p2766 = pneg %p2765
    $region34: #{tpu_custom_call.1} parent=5 // pred_check_branch
      %2768 = sbr.rel (%p2766) target = $region36
    $region35: #{tpu_custom_call.1} parent=5 // pred_region
      %s2769 = ssub.s32 %s8, 2
      // Predicated region
      $region37: #{tpu_custom_call.1} parent=35 // pred_check
        %p2770 = pneg %p89
      $region38: #{tpu_custom_call.1} parent=35 // pred_check_branch
        %2772 = sbr.rel (%p2770) target = $region40
      $region39: #{tpu_custom_call.1} parent=35 // pred_region
        %s2773 = smul.u32 60, %s14
        %p2774 = scmp.lt.s32.totalorder %s2773, 119
        %s2775 = scalar_select %p2774, %s2773, 119
        %s2776 = smul.addr %s2775, 2
        %s2777 = smul.addr %s2776, 8
        %s2778 = scalar_lea.vmem %s2, %s2777
      $region40: #{tpu_custom_call.1} parent=35 // pred_fallthru
        _
    $region36: #{tpu_custom_call.1} parent=5 // pred_fallthru
      _
  $region6: #{tpu_custom_call.1} parent=0 // loop_footer
    %s12 = sadd.s32 1, %s8
  $region7: #{tpu_custom_call.1} parent=0 // loop_footer_branch
    %7 = sbr.rel target = $region3
  $region8: #{tpu_custom_call.1} parent=0 // loop_exit
    _

</llo_original>
